<compile_context>
chip_gen: v5e
topology: v5e:2x2
jax: 0.10.0
libtpu: 0.0.40
codegen_flags: <defaults>
</compile_context>

<pallas_src>
import functools
import math

import jax
import jax.numpy as jnp
import numpy as np
from jax.experimental import pallas as pl
from jax.experimental.pallas import tpu as pltpu


# ----------------------------- helpers --------------------------------------

def _ceil_to(n, m):
    return ((n + m - 1) // m) * m


def _pad_to(x, shape):
    pads = [(0, t - s) for s, t in zip(x.shape, shape)]
    return jnp.pad(x, pads)


# ----------------------------- fused Pallas kernel ---------------------------

def _bert_forward_kernel(
    emb_ref, mask_ref, hm_ref, ones_ref,
    eg_ref, eb_ref,
    wqkv_ref, bqkv_ref,
    aow_ref, aob_ref, ag_ref, ab_ref,
    iw_ref, ib_ref, ow_ref, ob_ref, og_ref, obt_ref,
    pw_ref, pb_ref, cw_ref, cb_ref,
    out_ref,
    *, hidden, head_dim):
    f32 = jnp.float32
    bf16 = jnp.bfloat16
    num_layers = wqkv_ref.shape[0]
    num_heads = hm_ref.shape[0]
    hp = emb_ref.shape[-1]                  # padded (lane-dense) hidden width (128)
    inv_h = 1.0 / hidden
    scale = 1.0 / math.sqrt(head_dim)
    eps = 1e-12

    head_masks = hm_ref[...].astype(f32)                    # (nH, 1, HP) 0/1 lane masks
    hid_mask = jnp.sum(head_masks, axis=0)                  # (1, HP): 1 on the real H lanes
    ones_blk = ones_ref[...]                                 # (nH*S, nH*S) bf16 block-diag of ones

    def layer_norm(y, g, b):
        # statistics over the real `hidden` lanes only (padded lanes of y are zero) — f32
        mu = jnp.sum(y, axis=-1, keepdims=True) * inv_h
        yc = (y - mu) * hid_mask
        var = jnp.sum(yc * yc, axis=-1, keepdims=True) * inv_h
        return yc * jax.lax.rsqrt(var + eps) * g + b         # padded lanes stay exactly 0

    x = emb_ref[0].astype(f32)                               # (S, HP)
    add_mask = mask_ref[0].astype(f32)                       # (1, nH*S) additive key mask (head-tiled)
    x = layer_norm(x, eg_ref[...].astype(f32), eb_ref[...].astype(f32))

    for l in range(num_layers):            # static unroll: everything stays VMEM-resident
        # ---- fused QKV projection: one (S,HP)bf16 @ (HP,3*HP)bf16 MXU matmul ----
        qkv = (jnp.dot(x.astype(bf16), wqkv_ref[l], preferred_element_type=f32)
               + bqkv_ref[l])                                # (S, 3*HP) f32
        q = qkv[:, 0:hp]                                     # 128-aligned lane slices
        k = qkv[:, hp:2 * hp]
        v = qkv[:, 2 * hp:3 * hp]

        # ---- all heads at once: masked K / V stacked along sublanes -> (nH*S, HP) ----
        k_stack = jnp.concatenate([k * head_masks[h] for h in range(num_heads)], axis=0)
        v_stack = jnp.concatenate([v * head_masks[h] for h in range(num_heads)], axis=0)

        # ONE QK^T matmul for every head: (S, nH*S)
        s = jax.lax.dot_general(q.astype(bf16), k_stack.astype(bf16),
                                (((1,), (1,)), ((), ())),
                                preferred_element_type=f32) * scale + add_mask
        s_max = jnp.max(s, axis=-1, keepdims=True)            # single row-max (exact shift)
        p_un = jnp.exp(s - s_max)                              # f32; masked keys underflow to 0
        # per-head softmax denominators broadcast to every lane of their group (one tiny matmul)
        denom = jnp.dot(p_un.astype(bf16), ones_blk, preferred_element_type=f32)
        p = p_un * pl.reciprocal(denom, approx=True)           # EUP vrcp (free slot)

        # ONE matmul for the concatenated per-head context: (S, HP)
        ctx = jnp.dot(p.astype(bf16), v_stack.astype(bf16), preferred_element_type=f32)

        # ---- attention output projection + residual + layernorm ----
        attn_out = (jnp.dot(ctx.astype(bf16), aow_ref[l], preferred_element_type=f32)
                    + aob_ref[l])
        x = layer_norm(attn_out + x, ag_ref[l], ab_ref[l])

        # ---- fused FFN: the (S, IP) intermediate never leaves VMEM ----
        inter = jax.nn.gelu(
            jnp.dot(x.astype(bf16), iw_ref[l], preferred_element_type=f32) + ib_ref[l],
            approximate=True)
        ff = jnp.dot(inter.astype(bf16), ow_ref[l], preferred_element_type=f32) + ob_ref[l]
        x = layer_norm(ff + x, og_ref[l], obt_ref[l])

    # ---- epilogue: pooler + dropout(identity, eval) + classifier head (CLS row stored) ----
    pooled = jnp.tanh(jnp.dot(x.astype(bf16), pw_ref[...], preferred_element_type=f32)
                      + pb_ref[...])                          # (S, HP); 8 rows = 1 sublane tile
    logits = (jnp.dot(pooled.astype(bf16), cw_ref[...], preferred_element_type=f32)
              + cb_ref[...])                                  # (S, CP)
    out_ref[0] = logits[0:1, :].astype(out_ref.dtype)         # CLS row only, lane-dense store


# ----------------------------- model config & params -------------------------

CONFIG = dict(
    vocab_size=100,
    hidden_size=32,
    num_hidden_layers=2,
    num_attention_heads=4,
    intermediate_size=64,
    max_position_embeddings=16,
    type_vocab_size=2,
    n_class=3,
)


def init_params(key, cfg):
    H = cfg["hidden_size"]
    I = cfg["intermediate_size"]
    std = 0.02

    def nrm(k, shape):
        return (std * jax.random.normal(k, shape)).astype(jnp.float32)

    keys = iter(jax.random.split(key, 256))
    p = {
        "word_emb": nrm(next(keys), (cfg["vocab_size"], H)),
        "pos_emb": nrm(next(keys), (cfg["max_position_embeddings"], H)),
        "type_emb": nrm(next(keys), (cfg["type_vocab_size"], H)),
        "emb_ln_g": jnp.ones((H,), jnp.float32),
        "emb_ln_b": jnp.zeros((H,), jnp.float32),
        "layers": [],
        "pool_w": nrm(next(keys), (H, H)),
        "pool_b": jnp.zeros((H,), jnp.float32),
        "out_w": nrm(next(keys), (H, cfg["n_class"])),
        "out_b": jnp.zeros((cfg["n_class"],), jnp.float32),
    }
    for _ in range(cfg["num_hidden_layers"]):
        p["layers"].append({
            "q_w": nrm(next(keys), (H, H)), "q_b": jnp.zeros((H,), jnp.float32),
            "k_w": nrm(next(keys), (H, H)), "k_b": jnp.zeros((H,), jnp.float32),
            "v_w": nrm(next(keys), (H, H)), "v_b": jnp.zeros((H,), jnp.float32),
            "ao_w": nrm(next(keys), (H, H)), "ao_b": jnp.zeros((H,), jnp.float32),
            "aln_g": jnp.ones((H,), jnp.float32), "aln_b": jnp.zeros((H,), jnp.float32),
            "i_w": nrm(next(keys), (H, I)), "i_b": jnp.zeros((I,), jnp.float32),
            "o_w": nrm(next(keys), (I, H)), "o_b": jnp.zeros((H,), jnp.float32),
            "oln_g": jnp.ones((H,), jnp.float32), "oln_b": jnp.zeros((H,), jnp.float32),
        })
    return p


# ----------------------------- one-time weight prep (hoisted out of forward) -

def prepare_weights(params, cfg):
    """Pad to 128 lanes, stack per-layer weights, fuse QKV and convert matmul weights to bf16.

    Runs ONCE; the per-call forward only does the embedding gathers and the attention mask.
    """
    H = cfg["hidden_size"]
    I = cfg["intermediate_size"]
    nH = cfg["num_attention_heads"]
    dH = H // nH
    C = cfg["n_class"]
    HP = _ceil_to(H, 128)
    IP = _ceil_to(I, 128)
    CP = _ceil_to(C, 128)
    bf16 = jnp.bfloat16

    layers = params["layers"]

    def stack_w(name, rows, cols):          # matmul weights -> bf16
        return jnp.stack([_pad_to(lp[name], (rows, cols)) for lp in layers], 0).astype(bf16)

    def stack_b(name, cols):                # biases / LN params stay f32
        return jnp.stack([_pad_to(lp[name][None, :], (1, cols)) for lp in layers], 0)

    w_qkv = jnp.stack(
        [jnp.concatenate([_pad_to(lp["q_w"], (HP, HP)),
                          _pad_to(lp["k_w"], (HP, HP)),
                          _pad_to(lp["v_w"], (HP, HP))], axis=1) for lp in layers], 0).astype(bf16)
    b_qkv = jnp.stack(
        [jnp.concatenate([_pad_to(lp["q_b"][None, :], (1, HP)),
                          _pad_to(lp["k_b"][None, :], (1, HP)),
                          _pad_to(lp["v_b"][None, :], (1, HP))], axis=1) for lp in layers], 0)

    # per-head 0/1 lane masks over the padded hidden axis
    lane = jnp.arange(HP)[None, :]
    head_masks = jnp.stack(
        [((lane >= h * dH) & (lane < (h + 1) * dH)).astype(jnp.float32) for h in range(nH)], 0)

    return dict(
        word_emb=_pad_to(params["word_emb"], (params["word_emb"].shape[0], HP)),
        pos_emb=_pad_to(params["pos_emb"], (params["pos_emb"].shape[0], HP)),
        type_emb=_pad_to(params["type_emb"], (params["type_emb"].shape[0], HP)),
        emb_g=_pad_to(params["emb_ln_g"][None, :], (1, HP)),
        emb_b=_pad_to(params["emb_ln_b"][None, :], (1, HP)),
        head_masks=head_masks,
        w_qkv=w_qkv, b_qkv=b_qkv,
        ao_w=stack_w("ao_w", HP, HP), ao_b=stack_b("ao_b", HP),
        aln_g=stack_b("aln_g", HP), aln_b=stack_b("aln_b", HP),
        i_w=stack_w("i_w", HP, IP), i_b=stack_b("i_b", IP),
        o_w=stack_w("o_w", IP, HP), o_b=stack_b("o_b", HP),
        oln_g=stack_b("oln_g", HP), oln_b=stack_b("oln_b", HP),
        pool_w=_pad_to(params["pool_w"], (HP, HP)).astype(bf16),
        pool_b=_pad_to(params["pool_b"][None, :], (1, HP)),
        out_w=_pad_to(params["out_w"], (HP, CP)).astype(bf16),
        out_b=_pad_to(params["out_b"][None, :], (1, CP)),
    )


# ----------------------------- forward (glue + fused kernel) -----------------

def sentimental_classifier_forward(prep, input_ids, attention_mask, cfg):
    B, S = input_ids.shape
    H = cfg["hidden_size"]
    nH = cfg["num_attention_heads"]
    dH = H // nH
    C = cfg["n_class"]
    HP = prep["w_qkv"].shape[1]
    CP = prep["out_w"].shape[-1]

    # ---- embeddings (gathers kept as JAX glue; tables are pre-padded to 128 lanes) ----
    positions = jnp.arange(S, dtype=jnp.int32)
    token_type = jnp.zeros((B, S), jnp.int32)
    emb = (jnp.take(prep["word_emb"], input_ids, axis=0)
           + jnp.take(prep["pos_emb"], positions, axis=0)[None, :, :]
           + jnp.take(prep["type_emb"], token_type, axis=0)).astype(jnp.float32)   # (B, S, HP)

    # additive key mask tiled per head: (B, 1, nH*S); lane h*S+k carries mask for key k
    add_mask = ((1.0 - attention_mask.astype(jnp.float32)) * -10000.0)[:, None, :]
    add_mask_wide = jnp.tile(add_mask, (1, 1, nH))

    # block-diagonal ones (nH*S, nH*S): one matmul computes every head's softmax denominator
    grp = jnp.arange(nH * S) // S
    ones_blk = (grp[:, None] == grp[None, :]).astype(jnp.bfloat16)   # constant-folded under jit

    consts = (prep["head_masks"], ones_blk, prep["emb_g"], prep["emb_b"],
              prep["w_qkv"], prep["b_qkv"],
              prep["ao_w"], prep["ao_b"], prep["aln_g"], prep["aln_b"],
              prep["i_w"], prep["i_b"], prep["o_w"], prep["o_b"],
              prep["oln_g"], prep["oln_b"],
              prep["pool_w"], prep["pool_b"], prep["out_w"], prep["out_b"])

    def const_spec(a):
        nd = a.ndim
        return pl.BlockSpec(a.shape, lambda b, _nd=nd: (0,) * _nd)

    def batched_spec(a):
        tail = a.shape[1:]
        return pl.BlockSpec((1,) + tail,
                            lambda b, _n=len(tail): (b,) + (0,) * _n)

    kernel = functools.partial(_bert_forward_kernel, hidden=H, head_dim=dH)

    out = pl.pallas_call(
        kernel,
        out_shape=jax.ShapeDtypeStruct((B, 1, CP), jnp.float32),   # CLS row only
        grid=(B,),                                                 # one batch element per step
        in_specs=[batched_spec(emb), batched_spec(add_mask_wide)]
                 + [const_spec(a) for a in consts],
        out_specs=pl.BlockSpec((1, 1, CP), lambda b: (b, 0, 0)),
        compiler_params=pltpu.CompilerParams(
            dimension_semantics=("parallel",)),                    # v7x: one batch per TC
    )(emb, add_mask_wide, *consts)

    return out[:, 0, :C]                                           # un-padded logits


# ----------------------------- pure-JAX reference ----------------------------

def reference_forward(params, input_ids, attention_mask, cfg):
    B, S = input_ids.shape
    H = cfg["hidden_size"]
    nH = cfg["num_attention_heads"]
    dH = H // nH

    positions = jnp.arange(S, dtype=jnp.int32)
    token_type = jnp.zeros((B, S), jnp.int32)
    x = (jnp.take(params["word_emb"], input_ids, axis=0)
         + jnp.take(params["pos_emb"], positions, axis=0)[None, :, :]
         + jnp.take(params["type_emb"], token_type, axis=0))

    def ln(y, g, b):
        mu = y.mean(-1, keepdims=True)
        yc = y - mu
        var = (yc * yc).mean(-1, keepdims=True)
        return yc * jax.lax.rsqrt(var + 1e-12) * g + b

    x = ln(x, params["emb_ln_g"], params["emb_ln_b"])
    add_mask = (1.0 - attention_mask.astype(jnp.float32)) * -10000.0      # (B, S)

    for lp in params["layers"]:
        q = x @ lp["q_w"] + lp["q_b"]
        k = x @ lp["k_w"] + lp["k_b"]
        v = x @ lp["v_w"] + lp["v_b"]

        def heads(t):
            return t.reshape(B, S, nH, dH).transpose(0, 2, 1, 3)

        qh, kh, vh = heads(q), heads(k), heads(v)
        s = jnp.einsum("bhqd,bhkd->bhqk", qh, kh) / math.sqrt(dH)
        s = s + add_mask[:, None, None, :]
        p = jax.nn.softmax(s, axis=-1)
        ctx = jnp.einsum("bhqk,bhkd->bhqd", p, vh).transpose(0, 2, 1, 3).reshape(B, S, H)

        x = ln(ctx @ lp["ao_w"] + lp["ao_b"] + x, lp["aln_g"], lp["aln_b"])
        inter = jax.nn.gelu(x @ lp["i_w"] + lp["i_b"], approximate=True)
        x = ln(inter @ lp["o_w"] + lp["o_b"] + x, lp["oln_g"], lp["oln_b"])

    cls = x[:, 0, :]
    pooled = jnp.tanh(cls @ params["pool_w"] + params["pool_b"])
    return pooled @ params["out_w"] + params["out_b"]      # dropout = identity (eval)


# ----------------------------- main -----------------------------------------

if __name__ == "__main__":
    cfg = CONFIG
    key = jax.random.PRNGKey(0)
    k_param, k_ids = jax.random.split(key)

    params = init_params(k_param, cfg)
    prep = prepare_weights(params, cfg)      # one-time padding/stacking/bf16 conversion

    B, S = 2, 8
    input_ids = jax.random.randint(k_ids, (B, S), 0, cfg["vocab_size"], dtype=jnp.int32)
    attention_mask = jnp.ones((B, S), jnp.float32).at[1, 6:].set(0.0)    # 2nd example padded

    fwd = jax.jit(functools.partial(sentimental_classifier_forward, cfg=cfg))
    logits = jax.block_until_ready(fwd(prep, input_ids, attention_mask))
    assert logits.shape == (B, cfg["n_class"])

    ref = reference_forward(params, input_ids, attention_mask, cfg)
    # bf16 MXU matmuls + approx softmax reciprocal vs the pure-f32 reference -> ~1e-3-level diffs
    np.testing.assert_allclose(np.asarray(logits), np.asarray(ref), atol=3e-3, rtol=2e-2)

    print("KERNEL_OK")
</pallas_src>

<mosaic_0001>
module attributes {stable_mosaic.version = 11 : i64} {
  func.func @_bert_forward_kernel(%arg0: i32, %arg1: memref<1x8x128xf32, #tpu.memory_space<vmem>>, %arg2: memref<1x1x32xf32, #tpu.memory_space<vmem>>, %arg3: memref<4x1x128xf32, #tpu.memory_space<vmem>>, %arg4: memref<32x32xbf16, #tpu.memory_space<vmem>>, %arg5: memref<1x128xf32, #tpu.memory_space<vmem>>, %arg6: memref<1x128xf32, #tpu.memory_space<vmem>>, %arg7: memref<2x128x384xbf16, #tpu.memory_space<vmem>>, %arg8: memref<2x1x384xf32, #tpu.memory_space<vmem>>, %arg9: memref<2x128x128xbf16, #tpu.memory_space<vmem>>, %arg10: memref<2x1x128xf32, #tpu.memory_space<vmem>>, %arg11: memref<2x1x128xf32, #tpu.memory_space<vmem>>, %arg12: memref<2x1x128xf32, #tpu.memory_space<vmem>>, %arg13: memref<2x128x128xbf16, #tpu.memory_space<vmem>>, %arg14: memref<2x1x128xf32, #tpu.memory_space<vmem>>, %arg15: memref<2x128x128xbf16, #tpu.memory_space<vmem>>, %arg16: memref<2x1x128xf32, #tpu.memory_space<vmem>>, %arg17: memref<2x1x128xf32, #tpu.memory_space<vmem>>, %arg18: memref<2x1x128xf32, #tpu.memory_space<vmem>>, %arg19: memref<128x128xbf16, #tpu.memory_space<vmem>>, %arg20: memref<1x128xf32, #tpu.memory_space<vmem>>, %arg21: memref<128x128xbf16, #tpu.memory_space<vmem>>, %arg22: memref<1x128xf32, #tpu.memory_space<vmem>>, %arg23: memref<1x1x128xf32, #tpu.memory_space<vmem>>) attributes {dimension_semantics = [#tpu.dimension_semantics<parallel>], iteration_bounds = array<i64: 2>, scalar_prefetch = 0 : i64, scratch_operands = 0 : i64, tpu.core_type = #tpu.core_type<tc>, window_params = [{transform_indices = @transform_0, window_bounds = array<i64: 1, 8, 128>}, {transform_indices = @transform_1, window_bounds = array<i64: 1, 1, 32>}, {pipeline_mode = #tpu.pipeline_mode<synchronous>, transform_indices = @transform_2, window_bounds = array<i64: 4, 1, 128>}, {pipeline_mode = #tpu.pipeline_mode<synchronous>, transform_indices = @transform_3, window_bounds = array<i64: 32, 32>}, {pipeline_mode = #tpu.pipeline_mode<synchronous>, transform_indices = @transform_4, window_bounds = array<i64: 1, 128>}, {pipeline_mode = #tpu.pipeline_mode<synchronous>, transform_indices = @transform_5, window_bounds = array<i64: 1, 128>}, {pipeline_mode = #tpu.pipeline_mode<synchronous>, transform_indices = @transform_6, window_bounds = array<i64: 2, 128, 384>}, {pipeline_mode = #tpu.pipeline_mode<synchronous>, transform_indices = @transform_7, window_bounds = array<i64: 2, 1, 384>}, {pipeline_mode = #tpu.pipeline_mode<synchronous>, transform_indices = @transform_8, window_bounds = array<i64: 2, 128, 128>}, {pipeline_mode = #tpu.pipeline_mode<synchronous>, transform_indices = @transform_9, window_bounds = array<i64: 2, 1, 128>}, {pipeline_mode = #tpu.pipeline_mode<synchronous>, transform_indices = @transform_10, window_bounds = array<i64: 2, 1, 128>}, {pipeline_mode = #tpu.pipeline_mode<synchronous>, transform_indices = @transform_11, window_bounds = array<i64: 2, 1, 128>}, {pipeline_mode = #tpu.pipeline_mode<synchronous>, transform_indices = @transform_12, window_bounds = array<i64: 2, 128, 128>}, {pipeline_mode = #tpu.pipeline_mode<synchronous>, transform_indices = @transform_13, window_bounds = array<i64: 2, 1, 128>}, {pipeline_mode = #tpu.pipeline_mode<synchronous>, transform_indices = @transform_14, window_bounds = array<i64: 2, 128, 128>}, {pipeline_mode = #tpu.pipeline_mode<synchronous>, transform_indices = @transform_15, window_bounds = array<i64: 2, 1, 128>}, {pipeline_mode = #tpu.pipeline_mode<synchronous>, transform_indices = @transform_16, window_bounds = array<i64: 2, 1, 128>}, {pipeline_mode = #tpu.pipeline_mode<synchronous>, transform_indices = @transform_17, window_bounds = array<i64: 2, 1, 128>}, {pipeline_mode = #tpu.pipeline_mode<synchronous>, transform_indices = @transform_18, window_bounds = array<i64: 128, 128>}, {pipeline_mode = #tpu.pipeline_mode<synchronous>, transform_indices = @transform_19, window_bounds = array<i64: 1, 128>}, {pipeline_mode = #tpu.pipeline_mode<synchronous>, transform_indices = @transform_20, window_bounds = array<i64: 128, 128>}, {pipeline_mode = #tpu.pipeline_mode<synchronous>, transform_indices = @transform_21, window_bounds = array<i64: 1, 128>}, {transform_indices = @transform_22, window_bounds = array<i64: 1, 1, 128>}]} {
    %c0 = arith.constant 0 : index
    %c0_0 = arith.constant 0 : index
    %c0_1 = arith.constant 0 : index
    %0 = vector.load %arg3[%c0, %c0_0, %c0_1] : memref<4x1x128xf32, #tpu.memory_space<vmem>>, vector<4x1x128xf32>
    %cst = arith.constant dense<0.000000e+00> : vector<1x128xf32>
    %1 = vector.multi_reduction <add>, %0, %cst [0] : vector<4x1x128xf32> to vector<1x128xf32>
    %c0_2 = arith.constant 0 : index
    %c0_3 = arith.constant 0 : index
    %2 = vector.load %arg4[%c0_2, %c0_3] : memref<32x32xbf16, #tpu.memory_space<vmem>>, vector<32x32xbf16>
    %c0_4 = arith.constant 0 : index
    %c0_5 = arith.constant 0 : index
    %c0_6 = arith.constant 0 : index
    %3 = vector.load %arg1[%c0_4, %c0_5, %c0_6] : memref<1x8x128xf32, #tpu.memory_space<vmem>>, vector<1x8x128xf32>
    %4 = vector.shape_cast %3 : vector<1x8x128xf32> to vector<8x128xf32>
    %c0_7 = arith.constant 0 : index
    %c0_8 = arith.constant 0 : index
    %c0_9 = arith.constant 0 : index
    %5 = vector.load %arg2[%c0_7, %c0_8, %c0_9] : memref<1x1x32xf32, #tpu.memory_space<vmem>>, vector<1x1x32xf32>
    %6 = vector.shape_cast %5 : vector<1x1x32xf32> to vector<1x32xf32>
    %c0_10 = arith.constant 0 : index
    %c0_11 = arith.constant 0 : index
    %7 = vector.load %arg5[%c0_10, %c0_11] : memref<1x128xf32, #tpu.memory_space<vmem>>, vector<1x128xf32>
    %c0_12 = arith.constant 0 : index
    %c0_13 = arith.constant 0 : index
    %8 = vector.load %arg6[%c0_12, %c0_13] : memref<1x128xf32, #tpu.memory_space<vmem>>, vector<1x128xf32>
    %cst_14 = arith.constant dense<0.000000e+00> : vector<8xf32>
    %9 = vector.multi_reduction <add>, %4, %cst_14 [1] : vector<8x128xf32> to vector<8xf32>
    %10 = vector.shape_cast %9 : vector<8xf32> to vector<8x1xf32>
    %cst_15 = arith.constant 3.125000e-02 : f32
    %11 = vector.broadcast %cst_15 : f32 to vector<8x1xf32>
    %12 = arith.mulf %10, %11 : vector<8x1xf32>
    %13 = vector.broadcast %12 : vector<8x1xf32> to vector<8x128xf32>
    %14 = arith.subf %4, %13 : vector<8x128xf32>
    %15 = vector.broadcast %1 : vector<1x128xf32> to vector<8x128xf32>
    %16 = arith.mulf %14, %15 : vector<8x128xf32>
    %17 = arith.mulf %16, %16 : vector<8x128xf32>
    %cst_16 = arith.constant dense<0.000000e+00> : vector<8xf32>
    %18 = vector.multi_reduction <add>, %17, %cst_16 [1] : vector<8x128xf32> to vector<8xf32>
    %19 = vector.shape_cast %18 : vector<8xf32> to vector<8x1xf32>
    %cst_17 = arith.constant 3.125000e-02 : f32
    %20 = vector.broadcast %cst_17 : f32 to vector<8x1xf32>
    %21 = arith.mulf %19, %20 : vector<8x1xf32>
    %cst_18 = arith.constant 9.99999996E-13 : f32
    %22 = vector.broadcast %cst_18 : f32 to vector<8x1xf32>
    %23 = arith.addf %21, %22 : vector<8x1xf32>
    %24 = math.rsqrt %23 : vector<8x1xf32>
    %25 = vector.broadcast %24 : vector<8x1xf32> to vector<8x128xf32>
    %26 = arith.mulf %16, %25 : vector<8x128xf32>
    %27 = vector.broadcast %7 : vector<1x128xf32> to vector<8x128xf32>
    %28 = arith.mulf %26, %27 : vector<8x128xf32>
    %29 = vector.broadcast %8 : vector<1x128xf32> to vector<8x128xf32>
    %30 = arith.addf %28, %29 : vector<8x128xf32>
    %31 = arith.truncf %30 : vector<8x128xf32> to vector<8x128xbf16>
    %c0_19 = arith.constant 0 : index
    %c0_20 = arith.constant 0 : index
    %c0_21 = arith.constant 0 : index
    %32 = vector.load %arg7[%c0_19, %c0_20, %c0_21] : memref<2x128x384xbf16, #tpu.memory_space<vmem>>, vector<1x128x384xbf16>
    %33 = vector.shape_cast %32 : vector<1x128x384xbf16> to vector<128x384xbf16>
    %cst_22 = arith.constant dense<0.000000e+00> : vector<8x384xf32>
    %34 = tpu.matmul %31, %33, %cst_22 {dimension_numbers = #tpu.dot_dimension_numbers<[1], [0], [0], [1], [0, 0, 1, 1], [], []>} : vector<8x128xbf16>, vector<128x384xbf16>, vector<8x384xf32> -> vector<8x384xf32>
    %c0_23 = arith.constant 0 : index
    %c0_24 = arith.constant 0 : index
    %c0_25 = arith.constant 0 : index
    %35 = vector.load %arg8[%c0_23, %c0_24, %c0_25] : memref<2x1x384xf32, #tpu.memory_space<vmem>>, vector<1x1x384xf32>
    %36 = vector.shape_cast %35 : vector<1x1x384xf32> to vector<1x384xf32>
    %37 = vector.broadcast %36 : vector<1x384xf32> to vector<8x384xf32>
    %38 = arith.addf %34, %37 : vector<8x384xf32>
    %39 = vector.extract_strided_slice %38 {offsets = [0, 0], sizes = [8, 128], strides = [1, 1]} : vector<8x384xf32> to vector<8x128xf32>
    %40 = vector.extract_strided_slice %38 {offsets = [0, 128], sizes = [8, 128], strides = [1, 1]} : vector<8x384xf32> to vector<8x128xf32>
    %41 = vector.extract_strided_slice %38 {offsets = [0, 256], sizes = [8, 128], strides = [1, 1]} : vector<8x384xf32> to vector<8x128xf32>
    %42 = vector.extract_strided_slice %0 {offsets = [0, 0, 0], sizes = [1, 1, 128], strides = [1, 1, 1]} : vector<4x1x128xf32> to vector<1x1x128xf32>
    %43 = vector.shape_cast %42 : vector<1x1x128xf32> to vector<1x128xf32>
    %44 = vector.broadcast %43 : vector<1x128xf32> to vector<8x128xf32>
    %45 = arith.mulf %40, %44 : vector<8x128xf32>
    %46 = vector.extract_strided_slice %0 {offsets = [1, 0, 0], sizes = [1, 1, 128], strides = [1, 1, 1]} : vector<4x1x128xf32> to vector<1x1x128xf32>
    %47 = vector.shape_cast %46 : vector<1x1x128xf32> to vector<1x128xf32>
    %48 = vector.broadcast %47 : vector<1x128xf32> to vector<8x128xf32>
    %49 = arith.mulf %40, %48 : vector<8x128xf32>
    %50 = vector.extract_strided_slice %0 {offsets = [2, 0, 0], sizes = [1, 1, 128], strides = [1, 1, 1]} : vector<4x1x128xf32> to vector<1x1x128xf32>
    %51 = vector.shape_cast %50 : vector<1x1x128xf32> to vector<1x128xf32>
    %52 = vector.broadcast %51 : vector<1x128xf32> to vector<8x128xf32>
    %53 = arith.mulf %40, %52 : vector<8x128xf32>
    %54 = vector.extract_strided_slice %0 {offsets = [3, 0, 0], sizes = [1, 1, 128], strides = [1, 1, 1]} : vector<4x1x128xf32> to vector<1x1x128xf32>
    %55 = vector.shape_cast %54 : vector<1x1x128xf32> to vector<1x128xf32>
    %56 = vector.broadcast %55 : vector<1x128xf32> to vector<8x128xf32>
    %57 = arith.mulf %40, %56 : vector<8x128xf32>
    %58 = tpu.concatenate %45, %49, %53, %57 in 0 : vector<8x128xf32>, vector<8x128xf32>, vector<8x128xf32>, vector<8x128xf32> -> vector<32x128xf32>
    %59 = vector.extract_strided_slice %0 {offsets = [0, 0, 0], sizes = [1, 1, 128], strides = [1, 1, 1]} : vector<4x1x128xf32> to vector<1x1x128xf32>
    %60 = vector.shape_cast %59 : vector<1x1x128xf32> to vector<1x128xf32>
    %61 = vector.broadcast %60 : vector<1x128xf32> to vector<8x128xf32>
    %62 = arith.mulf %41, %61 : vector<8x128xf32>
    %63 = vector.extract_strided_slice %0 {offsets = [1, 0, 0], sizes = [1, 1, 128], strides = [1, 1, 1]} : vector<4x1x128xf32> to vector<1x1x128xf32>
    %64 = vector.shape_cast %63 : vector<1x1x128xf32> to vector<1x128xf32>
    %65 = vector.broadcast %64 : vector<1x128xf32> to vector<8x128xf32>
    %66 = arith.mulf %41, %65 : vector<8x128xf32>
    %67 = vector.extract_strided_slice %0 {offsets = [2, 0, 0], sizes = [1, 1, 128], strides = [1, 1, 1]} : vector<4x1x128xf32> to vector<1x1x128xf32>
    %68 = vector.shape_cast %67 : vector<1x1x128xf32> to vector<1x128xf32>
    %69 = vector.broadcast %68 : vector<1x128xf32> to vector<8x128xf32>
    %70 = arith.mulf %41, %69 : vector<8x128xf32>
    %71 = vector.extract_strided_slice %0 {offsets = [3, 0, 0], sizes = [1, 1, 128], strides = [1, 1, 1]} : vector<4x1x128xf32> to vector<1x1x128xf32>
    %72 = vector.shape_cast %71 : vector<1x1x128xf32> to vector<1x128xf32>
    %73 = vector.broadcast %72 : vector<1x128xf32> to vector<8x128xf32>
    %74 = arith.mulf %41, %73 : vector<8x128xf32>
    %75 = tpu.concatenate %62, %66, %70, %74 in 0 : vector<8x128xf32>, vector<8x128xf32>, vector<8x128xf32>, vector<8x128xf32> -> vector<32x128xf32>
    %76 = arith.truncf %39 : vector<8x128xf32> to vector<8x128xbf16>
    %77 = arith.truncf %58 : vector<32x128xf32> to vector<32x128xbf16>
    %cst_26 = arith.constant dense<0.000000e+00> : vector<8x32xf32>
    %78 = tpu.matmul %76, %77, %cst_26 {dimension_numbers = #tpu.dot_dimension_numbers<[1], [1], [0], [0], [0, 0, 1, 0], [], []>} : vector<8x128xbf16>, vector<32x128xbf16>, vector<8x32xf32> -> vector<8x32xf32>
    %cst_27 = arith.constant 0.353553385 : f32
    %79 = vector.broadcast %cst_27 : f32 to vector<8x32xf32>
    %80 = arith.mulf %78, %79 : vector<8x32xf32>
    %81 = vector.broadcast %6 : vector<1x32xf32> to vector<8x32xf32>
    %82 = arith.addf %80, %81 : vector<8x32xf32>
    %cst_28 = arith.constant dense<0xFF800000> : vector<8xf32>
    %83 = vector.multi_reduction <maximumf>, %82, %cst_28 [1] : vector<8x32xf32> to vector<8xf32>
    %84 = vector.shape_cast %83 : vector<8xf32> to vector<8x1xf32>
    %85 = vector.broadcast %84 : vector<8x1xf32> to vector<8x32xf32>
    %86 = arith.subf %82, %85 : vector<8x32xf32>
    %87 = math.exp %86 : vector<8x32xf32>
    %88 = arith.truncf %87 : vector<8x32xf32> to vector<8x32xbf16>
    %cst_29 = arith.constant dense<0.000000e+00> : vector<8x32xf32>
    %89 = tpu.matmul %88, %2, %cst_29 {dimension_numbers = #tpu.dot_dimension_numbers<[1], [0], [0], [1], [0, 0, 1, 1], [], []>} : vector<8x32xbf16>, vector<32x32xbf16>, vector<8x32xf32> -> vector<8x32xf32>
    %90 = tpu.reciprocal %89 {approx = true} : vector<8x32xf32> -> vector<8x32xf32>
    %91 = arith.mulf %87, %90 : vector<8x32xf32>
    %92 = arith.truncf %91 : vector<8x32xf32> to vector<8x32xbf16>
    %93 = arith.truncf %75 : vector<32x128xf32> to vector<32x128xbf16>
    %cst_30 = arith.constant dense<0.000000e+00> : vector<8x128xf32>
    %94 = tpu.matmul %92, %93, %cst_30 {dimension_numbers = #tpu.dot_dimension_numbers<[1], [0], [0], [1], [0, 0, 1, 1], [], []>} : vector<8x32xbf16>, vector<32x128xbf16>, vector<8x128xf32> -> vector<8x128xf32>
    %95 = arith.truncf %94 : vector<8x128xf32> to vector<8x128xbf16>
    %c0_31 = arith.constant 0 : index
    %c0_32 = arith.constant 0 : index
    %c0_33 = arith.constant 0 : index
    %96 = vector.load %arg9[%c0_31, %c0_32, %c0_33] : memref<2x128x128xbf16, #tpu.memory_space<vmem>>, vector<1x128x128xbf16>
    %97 = vector.shape_cast %96 : vector<1x128x128xbf16> to vector<128x128xbf16>
    %cst_34 = arith.constant dense<0.000000e+00> : vector<8x128xf32>
    %98 = tpu.matmul %95, %97, %cst_34 {dimension_numbers = #tpu.dot_dimension_numbers<[1], [0], [0], [1], [0, 0, 1, 1], [], []>} : vector<8x128xbf16>, vector<128x128xbf16>, vector<8x128xf32> -> vector<8x128xf32>
    %c0_35 = arith.constant 0 : index
    %c0_36 = arith.constant 0 : index
    %c0_37 = arith.constant 0 : index
    %99 = vector.load %arg10[%c0_35, %c0_36, %c0_37] : memref<2x1x128xf32, #tpu.memory_space<vmem>>, vector<1x1x128xf32>
    %100 = vector.shape_cast %99 : vector<1x1x128xf32> to vector<1x128xf32>
    %101 = vector.broadcast %100 : vector<1x128xf32> to vector<8x128xf32>
    %102 = arith.addf %98, %101 : vector<8x128xf32>
    %103 = arith.addf %102, %30 : vector<8x128xf32>
    %c0_38 = arith.constant 0 : index
    %c0_39 = arith.constant 0 : index
    %c0_40 = arith.constant 0 : index
    %104 = vector.load %arg11[%c0_38, %c0_39, %c0_40] : memref<2x1x128xf32, #tpu.memory_space<vmem>>, vector<1x1x128xf32>
    %105 = vector.shape_cast %104 : vector<1x1x128xf32> to vector<1x128xf32>
    %c0_41 = arith.constant 0 : index
    %c0_42 = arith.constant 0 : index
    %c0_43 = arith.constant 0 : index
    %106 = vector.load %arg12[%c0_41, %c0_42, %c0_43] : memref<2x1x128xf32, #tpu.memory_space<vmem>>, vector<1x1x128xf32>
    %107 = vector.shape_cast %106 : vector<1x1x128xf32> to vector<1x128xf32>
    %cst_44 = arith.constant dense<0.000000e+00> : vector<8xf32>
    %108 = vector.multi_reduction <add>, %103, %cst_44 [1] : vector<8x128xf32> to vector<8xf32>
    %109 = vector.shape_cast %108 : vector<8xf32> to vector<8x1xf32>
    %cst_45 = arith.constant 3.125000e-02 : f32
    %110 = vector.broadcast %cst_45 : f32 to vector<8x1xf32>
    %111 = arith.mulf %109, %110 : vector<8x1xf32>
    %112 = vector.broadcast %111 : vector<8x1xf32> to vector<8x128xf32>
    %113 = arith.subf %103, %112 : vector<8x128xf32>
    %114 = vector.broadcast %1 : vector<1x128xf32> to vector<8x128xf32>
    %115 = arith.mulf %113, %114 : vector<8x128xf32>
    %116 = arith.mulf %115, %115 : vector<8x128xf32>
    %cst_46 = arith.constant dense<0.000000e+00> : vector<8xf32>
    %117 = vector.multi_reduction <add>, %116, %cst_46 [1] : vector<8x128xf32> to vector<8xf32>
    %118 = vector.shape_cast %117 : vector<8xf32> to vector<8x1xf32>
    %cst_47 = arith.constant 3.125000e-02 : f32
    %119 = vector.broadcast %cst_47 : f32 to vector<8x1xf32>
    %120 = arith.mulf %118, %119 : vector<8x1xf32>
    %cst_48 = arith.constant 9.99999996E-13 : f32
    %121 = vector.broadcast %cst_48 : f32 to vector<8x1xf32>
    %122 = arith.addf %120, %121 : vector<8x1xf32>
    %123 = math.rsqrt %122 : vector<8x1xf32>
    %124 = vector.broadcast %123 : vector<8x1xf32> to vector<8x128xf32>
    %125 = arith.mulf %115, %124 : vector<8x128xf32>
    %126 = vector.broadcast %105 : vector<1x128xf32> to vector<8x128xf32>
    %127 = arith.mulf %125, %126 : vector<8x128xf32>
    %128 = vector.broadcast %107 : vector<1x128xf32> to vector<8x128xf32>
    %129 = arith.addf %127, %128 : vector<8x128xf32>
    %130 = arith.truncf %129 : vector<8x128xf32> to vector<8x128xbf16>
    %c0_49 = arith.constant 0 : index
    %c0_50 = arith.constant 0 : index
    %c0_51 = arith.constant 0 : index
    %131 = vector.load %arg13[%c0_49, %c0_50, %c0_51] : memref<2x128x128xbf16, #tpu.memory_space<vmem>>, vector<1x128x128xbf16>
    %132 = vector.shape_cast %131 : vector<1x128x128xbf16> to vector<128x128xbf16>
    %cst_52 = arith.constant dense<0.000000e+00> : vector<8x128xf32>
    %133 = tpu.matmul %130, %132, %cst_52 {dimension_numbers = #tpu.dot_dimension_numbers<[1], [0], [0], [1], [0, 0, 1, 1], [], []>} : vector<8x128xbf16>, vector<128x128xbf16>, vector<8x128xf32> -> vector<8x128xf32>
    %c0_53 = arith.constant 0 : index
    %c0_54 = arith.constant 0 : index
    %c0_55 = arith.constant 0 : index
    %134 = vector.load %arg14[%c0_53, %c0_54, %c0_55] : memref<2x1x128xf32, #tpu.memory_space<vmem>>, vector<1x1x128xf32>
    %135 = vector.shape_cast %134 : vector<1x1x128xf32> to vector<1x128xf32>
    %136 = vector.broadcast %135 : vector<1x128xf32> to vector<8x128xf32>
    %137 = arith.addf %133, %136 : vector<8x128xf32>
    %138 = arith.mulf %137, %137 : vector<8x128xf32>
    %139 = arith.mulf %137, %138 : vector<8x128xf32>
    %cst_56 = arith.constant 4.471500e-02 : f32
    %140 = vector.broadcast %cst_56 : f32 to vector<8x128xf32>
    %141 = arith.mulf %140, %139 : vector<8x128xf32>
    %142 = arith.addf %137, %141 : vector<8x128xf32>
    %cst_57 = arith.constant 0.797884583 : f32
    %143 = vector.broadcast %cst_57 : f32 to vector<8x128xf32>
    %144 = arith.mulf %143, %142 : vector<8x128xf32>
    %145 = math.tanh %144 : vector<8x128xf32>
    %cst_58 = arith.constant 1.000000e+00 : f32
    %146 = vector.broadcast %cst_58 : f32 to vector<8x128xf32>
    %147 = arith.addf %146, %145 : vector<8x128xf32>
    %cst_59 = arith.constant 5.000000e-01 : f32
    %148 = vector.broadcast %cst_59 : f32 to vector<8x128xf32>
    %149 = arith.mulf %148, %147 : vector<8x128xf32>
    %150 = arith.mulf %137, %149 : vector<8x128xf32>
    %151 = arith.truncf %150 : vector<8x128xf32> to vector<8x128xbf16>
    %c0_60 = arith.constant 0 : index
    %c0_61 = arith.constant 0 : index
    %c0_62 = arith.constant 0 : index
    %152 = vector.load %arg15[%c0_60, %c0_61, %c0_62] : memref<2x128x128xbf16, #tpu.memory_space<vmem>>, vector<1x128x128xbf16>
    %153 = vector.shape_cast %152 : vector<1x128x128xbf16> to vector<128x128xbf16>
    %cst_63 = arith.constant dense<0.000000e+00> : vector<8x128xf32>
    %154 = tpu.matmul %151, %153, %cst_63 {dimension_numbers = #tpu.dot_dimension_numbers<[1], [0], [0], [1], [0, 0, 1, 1], [], []>} : vector<8x128xbf16>, vector<128x128xbf16>, vector<8x128xf32> -> vector<8x128xf32>
    %c0_64 = arith.constant 0 : index
    %c0_65 = arith.constant 0 : index
    %c0_66 = arith.constant 0 : index
    %155 = vector.load %arg16[%c0_64, %c0_65, %c0_66] : memref<2x1x128xf32, #tpu.memory_space<vmem>>, vector<1x1x128xf32>
    %156 = vector.shape_cast %155 : vector<1x1x128xf32> to vector<1x128xf32>
    %157 = vector.broadcast %156 : vector<1x128xf32> to vector<8x128xf32>
    %158 = arith.addf %154, %157 : vector<8x128xf32>
    %159 = arith.addf %158, %129 : vector<8x128xf32>
    %c0_67 = arith.constant 0 : index
    %c0_68 = arith.constant 0 : index
    %c0_69 = arith.constant 0 : index
    %160 = vector.load %arg17[%c0_67, %c0_68, %c0_69] : memref<2x1x128xf32, #tpu.memory_space<vmem>>, vector<1x1x128xf32>
    %161 = vector.shape_cast %160 : vector<1x1x128xf32> to vector<1x128xf32>
    %c0_70 = arith.constant 0 : index
    %c0_71 = arith.constant 0 : index
    %c0_72 = arith.constant 0 : index
    %162 = vector.load %arg18[%c0_70, %c0_71, %c0_72] : memref<2x1x128xf32, #tpu.memory_space<vmem>>, vector<1x1x128xf32>
    %163 = vector.shape_cast %162 : vector<1x1x128xf32> to vector<1x128xf32>
    %cst_73 = arith.constant dense<0.000000e+00> : vector<8xf32>
    %164 = vector.multi_reduction <add>, %159, %cst_73 [1] : vector<8x128xf32> to vector<8xf32>
    %165 = vector.shape_cast %164 : vector<8xf32> to vector<8x1xf32>
    %cst_74 = arith.constant 3.125000e-02 : f32
    %166 = vector.broadcast %cst_74 : f32 to vector<8x1xf32>
    %167 = arith.mulf %165, %166 : vector<8x1xf32>
    %168 = vector.broadcast %167 : vector<8x1xf32> to vector<8x128xf32>
    %169 = arith.subf %159, %168 : vector<8x128xf32>
    %170 = vector.broadcast %1 : vector<1x128xf32> to vector<8x128xf32>
    %171 = arith.mulf %169, %170 : vector<8x128xf32>
    %172 = arith.mulf %171, %171 : vector<8x128xf32>
    %cst_75 = arith.constant dense<0.000000e+00> : vector<8xf32>
    %173 = vector.multi_reduction <add>, %172, %cst_75 [1] : vector<8x128xf32> to vector<8xf32>
    %174 = vector.shape_cast %173 : vector<8xf32> to vector<8x1xf32>
    %cst_76 = arith.constant 3.125000e-02 : f32
    %175 = vector.broadcast %cst_76 : f32 to vector<8x1xf32>
    %176 = arith.mulf %174, %175 : vector<8x1xf32>
    %cst_77 = arith.constant 9.99999996E-13 : f32
    %177 = vector.broadcast %cst_77 : f32 to vector<8x1xf32>
    %178 = arith.addf %176, %177 : vector<8x1xf32>
    %179 = math.rsqrt %178 : vector<8x1xf32>
    %180 = vector.broadcast %179 : vector<8x1xf32> to vector<8x128xf32>
    %181 = arith.mulf %171, %180 : vector<8x128xf32>
    %182 = vector.broadcast %161 : vector<1x128xf32> to vector<8x128xf32>
    %183 = arith.mulf %181, %182 : vector<8x128xf32>
    %184 = vector.broadcast %163 : vector<1x128xf32> to vector<8x128xf32>
    %185 = arith.addf %183, %184 : vector<8x128xf32>
    %186 = arith.truncf %185 : vector<8x128xf32> to vector<8x128xbf16>
    %c1 = arith.constant 1 : index
    %c0_78 = arith.constant 0 : index
    %c0_79 = arith.constant 0 : index
    %187 = vector.load %arg7[%c1, %c0_78, %c0_79] : memref<2x128x384xbf16, #tpu.memory_space<vmem>>, vector<1x128x384xbf16>
    %188 = vector.shape_cast %187 : vector<1x128x384xbf16> to vector<128x384xbf16>
    %cst_80 = arith.constant dense<0.000000e+00> : vector<8x384xf32>
    %189 = tpu.matmul %186, %188, %cst_80 {dimension_numbers = #tpu.dot_dimension_numbers<[1], [0], [0], [1], [0, 0, 1, 1], [], []>} : vector<8x128xbf16>, vector<128x384xbf16>, vector<8x384xf32> -> vector<8x384xf32>
    %c1_81 = arith.constant 1 : index
    %c0_82 = arith.constant 0 : index
    %c0_83 = arith.constant 0 : index
    %190 = vector.load %arg8[%c1_81, %c0_82, %c0_83] : memref<2x1x384xf32, #tpu.memory_space<vmem>>, vector<1x1x384xf32>
    %191 = vector.shape_cast %190 : vector<1x1x384xf32> to vector<1x384xf32>
    %192 = vector.broadcast %191 : vector<1x384xf32> to vector<8x384xf32>
    %193 = arith.addf %189, %192 : vector<8x384xf32>
    %194 = vector.extract_strided_slice %193 {offsets = [0, 0], sizes = [8, 128], strides = [1, 1]} : vector<8x384xf32> to vector<8x128xf32>
    %195 = vector.extract_strided_slice %193 {offsets = [0, 128], sizes = [8, 128], strides = [1, 1]} : vector<8x384xf32> to vector<8x128xf32>
    %196 = vector.extract_strided_slice %193 {offsets = [0, 256], sizes = [8, 128], strides = [1, 1]} : vector<8x384xf32> to vector<8x128xf32>
    %197 = vector.extract_strided_slice %0 {offsets = [0, 0, 0], sizes = [1, 1, 128], strides = [1, 1, 1]} : vector<4x1x128xf32> to vector<1x1x128xf32>
    %198 = vector.shape_cast %197 : vector<1x1x128xf32> to vector<1x128xf32>
    %199 = vector.broadcast %198 : vector<1x128xf32> to vector<8x128xf32>
    %200 = arith.mulf %195, %199 : vector<8x128xf32>
    %201 = vector.extract_strided_slice %0 {offsets = [1, 0, 0], sizes = [1, 1, 128], strides = [1, 1, 1]} : vector<4x1x128xf32> to vector<1x1x128xf32>
    %202 = vector.shape_cast %201 : vector<1x1x128xf32> to vector<1x128xf32>
    %203 = vector.broadcast %202 : vector<1x128xf32> to vector<8x128xf32>
    %204 = arith.mulf %195, %203 : vector<8x128xf32>
    %205 = vector.extract_strided_slice %0 {offsets = [2, 0, 0], sizes = [1, 1, 128], strides = [1, 1, 1]} : vector<4x1x128xf32> to vector<1x1x128xf32>
    %206 = vector.shape_cast %205 : vector<1x1x128xf32> to vector<1x128xf32>
    %207 = vector.broadcast %206 : vector<1x128xf32> to vector<8x128xf32>
    %208 = arith.mulf %195, %207 : vector<8x128xf32>
    %209 = vector.extract_strided_slice %0 {offsets = [3, 0, 0], sizes = [1, 1, 128], strides = [1, 1, 1]} : vector<4x1x128xf32> to vector<1x1x128xf32>
    %210 = vector.shape_cast %209 : vector<1x1x128xf32> to vector<1x128xf32>
    %211 = vector.broadcast %210 : vector<1x128xf32> to vector<8x128xf32>
    %212 = arith.mulf %195, %211 : vector<8x128xf32>
    %213 = tpu.concatenate %200, %204, %208, %212 in 0 : vector<8x128xf32>, vector<8x128xf32>, vector<8x128xf32>, vector<8x128xf32> -> vector<32x128xf32>
    %214 = vector.extract_strided_slice %0 {offsets = [0, 0, 0], sizes = [1, 1, 128], strides = [1, 1, 1]} : vector<4x1x128xf32> to vector<1x1x128xf32>
    %215 = vector.shape_cast %214 : vector<1x1x128xf32> to vector<1x128xf32>
    %216 = vector.broadcast %215 : vector<1x128xf32> to vector<8x128xf32>
    %217 = arith.mulf %196, %216 : vector<8x128xf32>
    %218 = vector.extract_strided_slice %0 {offsets = [1, 0, 0], sizes = [1, 1, 128], strides = [1, 1, 1]} : vector<4x1x128xf32> to vector<1x1x128xf32>
    %219 = vector.shape_cast %218 : vector<1x1x128xf32> to vector<1x128xf32>
    %220 = vector.broadcast %219 : vector<1x128xf32> to vector<8x128xf32>
    %221 = arith.mulf %196, %220 : vector<8x128xf32>
    %222 = vector.extract_strided_slice %0 {offsets = [2, 0, 0], sizes = [1, 1, 128], strides = [1, 1, 1]} : vector<4x1x128xf32> to vector<1x1x128xf32>
    %223 = vector.shape_cast %222 : vector<1x1x128xf32> to vector<1x128xf32>
    %224 = vector.broadcast %223 : vector<1x128xf32> to vector<8x128xf32>
    %225 = arith.mulf %196, %224 : vector<8x128xf32>
    %226 = vector.extract_strided_slice %0 {offsets = [3, 0, 0], sizes = [1, 1, 128], strides = [1, 1, 1]} : vector<4x1x128xf32> to vector<1x1x128xf32>
    %227 = vector.shape_cast %226 : vector<1x1x128xf32> to vector<1x128xf32>
    %228 = vector.broadcast %227 : vector<1x128xf32> to vector<8x128xf32>
    %229 = arith.mulf %196, %228 : vector<8x128xf32>
    %230 = tpu.concatenate %217, %221, %225, %229 in 0 : vector<8x128xf32>, vector<8x128xf32>, vector<8x128xf32>, vector<8x128xf32> -> vector<32x128xf32>
    %231 = arith.truncf %194 : vector<8x128xf32> to vector<8x128xbf16>
    %232 = arith.truncf %213 : vector<32x128xf32> to vector<32x128xbf16>
    %cst_84 = arith.constant dense<0.000000e+00> : vector<8x32xf32>
    %233 = tpu.matmul %231, %232, %cst_84 {dimension_numbers = #tpu.dot_dimension_numbers<[1], [1], [0], [0], [0, 0, 1, 0], [], []>} : vector<8x128xbf16>, vector<32x128xbf16>, vector<8x32xf32> -> vector<8x32xf32>
    %cst_85 = arith.constant 0.353553385 : f32
    %234 = vector.broadcast %cst_85 : f32 to vector<8x32xf32>
    %235 = arith.mulf %233, %234 : vector<8x32xf32>
    %236 = vector.broadcast %6 : vector<1x32xf32> to vector<8x32xf32>
    %237 = arith.addf %235, %236 : vector<8x32xf32>
    %cst_86 = arith.constant dense<0xFF800000> : vector<8xf32>
    %238 = vector.multi_reduction <maximumf>, %237, %cst_86 [1] : vector<8x32xf32> to vector<8xf32>
    %239 = vector.shape_cast %238 : vector<8xf32> to vector<8x1xf32>
    %240 = vector.broadcast %239 : vector<8x1xf32> to vector<8x32xf32>
    %241 = arith.subf %237, %240 : vector<8x32xf32>
    %242 = math.exp %241 : vector<8x32xf32>
    %243 = arith.truncf %242 : vector<8x32xf32> to vector<8x32xbf16>
    %cst_87 = arith.constant dense<0.000000e+00> : vector<8x32xf32>
    %244 = tpu.matmul %243, %2, %cst_87 {dimension_numbers = #tpu.dot_dimension_numbers<[1], [0], [0], [1], [0, 0, 1, 1], [], []>} : vector<8x32xbf16>, vector<32x32xbf16>, vector<8x32xf32> -> vector<8x32xf32>
    %245 = tpu.reciprocal %244 {approx = true} : vector<8x32xf32> -> vector<8x32xf32>
    %246 = arith.mulf %242, %245 : vector<8x32xf32>
    %247 = arith.truncf %246 : vector<8x32xf32> to vector<8x32xbf16>
    %248 = arith.truncf %230 : vector<32x128xf32> to vector<32x128xbf16>
    %cst_88 = arith.constant dense<0.000000e+00> : vector<8x128xf32>
    %249 = tpu.matmul %247, %248, %cst_88 {dimension_numbers = #tpu.dot_dimension_numbers<[1], [0], [0], [1], [0, 0, 1, 1], [], []>} : vector<8x32xbf16>, vector<32x128xbf16>, vector<8x128xf32> -> vector<8x128xf32>
    %250 = arith.truncf %249 : vector<8x128xf32> to vector<8x128xbf16>
    %c1_89 = arith.constant 1 : index
    %c0_90 = arith.constant 0 : index
    %c0_91 = arith.constant 0 : index
    %251 = vector.load %arg9[%c1_89, %c0_90, %c0_91] : memref<2x128x128xbf16, #tpu.memory_space<vmem>>, vector<1x128x128xbf16>
    %252 = vector.shape_cast %251 : vector<1x128x128xbf16> to vector<128x128xbf16>
    %cst_92 = arith.constant dense<0.000000e+00> : vector<8x128xf32>
    %253 = tpu.matmul %250, %252, %cst_92 {dimension_numbers = #tpu.dot_dimension_numbers<[1], [0], [0], [1], [0, 0, 1, 1], [], []>} : vector<8x128xbf16>, vector<128x128xbf16>, vector<8x128xf32> -> vector<8x128xf32>
    %c1_93 = arith.constant 1 : index
    %c0_94 = arith.constant 0 : index
    %c0_95 = arith.constant 0 : index
    %254 = vector.load %arg10[%c1_93, %c0_94, %c0_95] : memref<2x1x128xf32, #tpu.memory_space<vmem>>, vector<1x1x128xf32>
    %255 = vector.shape_cast %254 : vector<1x1x128xf32> to vector<1x128xf32>
    %256 = vector.broadcast %255 : vector<1x128xf32> to vector<8x128xf32>
    %257 = arith.addf %253, %256 : vector<8x128xf32>
    %258 = arith.addf %257, %185 : vector<8x128xf32>
    %c1_96 = arith.constant 1 : index
    %c0_97 = arith.constant 0 : index
    %c0_98 = arith.constant 0 : index
    %259 = vector.load %arg11[%c1_96, %c0_97, %c0_98] : memref<2x1x128xf32, #tpu.memory_space<vmem>>, vector<1x1x128xf32>
    %260 = vector.shape_cast %259 : vector<1x1x128xf32> to vector<1x128xf32>
    %c1_99 = arith.constant 1 : index
    %c0_100 = arith.constant 0 : index
    %c0_101 = arith.constant 0 : index
    %261 = vector.load %arg12[%c1_99, %c0_100, %c0_101] : memref<2x1x128xf32, #tpu.memory_space<vmem>>, vector<1x1x128xf32>
    %262 = vector.shape_cast %261 : vector<1x1x128xf32> to vector<1x128xf32>
    %cst_102 = arith.constant dense<0.000000e+00> : vector<8xf32>
    %263 = vector.multi_reduction <add>, %258, %cst_102 [1] : vector<8x128xf32> to vector<8xf32>
    %264 = vector.shape_cast %263 : vector<8xf32> to vector<8x1xf32>
    %cst_103 = arith.constant 3.125000e-02 : f32
    %265 = vector.broadcast %cst_103 : f32 to vector<8x1xf32>
    %266 = arith.mulf %264, %265 : vector<8x1xf32>
    %267 = vector.broadcast %266 : vector<8x1xf32> to vector<8x128xf32>
    %268 = arith.subf %258, %267 : vector<8x128xf32>
    %269 = vector.broadcast %1 : vector<1x128xf32> to vector<8x128xf32>
    %270 = arith.mulf %268, %269 : vector<8x128xf32>
    %271 = arith.mulf %270, %270 : vector<8x128xf32>
    %cst_104 = arith.constant dense<0.000000e+00> : vector<8xf32>
    %272 = vector.multi_reduction <add>, %271, %cst_104 [1] : vector<8x128xf32> to vector<8xf32>
    %273 = vector.shape_cast %272 : vector<8xf32> to vector<8x1xf32>
    %cst_105 = arith.constant 3.125000e-02 : f32
    %274 = vector.broadcast %cst_105 : f32 to vector<8x1xf32>
    %275 = arith.mulf %273, %274 : vector<8x1xf32>
    %cst_106 = arith.constant 9.99999996E-13 : f32
    %276 = vector.broadcast %cst_106 : f32 to vector<8x1xf32>
    %277 = arith.addf %275, %276 : vector<8x1xf32>
    %278 = math.rsqrt %277 : vector<8x1xf32>
    %279 = vector.broadcast %278 : vector<8x1xf32> to vector<8x128xf32>
    %280 = arith.mulf %270, %279 : vector<8x128xf32>
    %281 = vector.broadcast %260 : vector<1x128xf32> to vector<8x128xf32>
    %282 = arith.mulf %280, %281 : vector<8x128xf32>
    %283 = vector.broadcast %262 : vector<1x128xf32> to vector<8x128xf32>
    %284 = arith.addf %282, %283 : vector<8x128xf32>
    %285 = arith.truncf %284 : vector<8x128xf32> to vector<8x128xbf16>
    %c1_107 = arith.constant 1 : index
    %c0_108 = arith.constant 0 : index
    %c0_109 = arith.constant 0 : index
    %286 = vector.load %arg13[%c1_107, %c0_108, %c0_109] : memref<2x128x128xbf16, #tpu.memory_space<vmem>>, vector<1x128x128xbf16>
    %287 = vector.shape_cast %286 : vector<1x128x128xbf16> to vector<128x128xbf16>
    %cst_110 = arith.constant dense<0.000000e+00> : vector<8x128xf32>
    %288 = tpu.matmul %285, %287, %cst_110 {dimension_numbers = #tpu.dot_dimension_numbers<[1], [0], [0], [1], [0, 0, 1, 1], [], []>} : vector<8x128xbf16>, vector<128x128xbf16>, vector<8x128xf32> -> vector<8x128xf32>
    %c1_111 = arith.constant 1 : index
    %c0_112 = arith.constant 0 : index
    %c0_113 = arith.constant 0 : index
    %289 = vector.load %arg14[%c1_111, %c0_112, %c0_113] : memref<2x1x128xf32, #tpu.memory_space<vmem>>, vector<1x1x128xf32>
    %290 = vector.shape_cast %289 : vector<1x1x128xf32> to vector<1x128xf32>
    %291 = vector.broadcast %290 : vector<1x128xf32> to vector<8x128xf32>
    %292 = arith.addf %288, %291 : vector<8x128xf32>
    %293 = arith.mulf %292, %292 : vector<8x128xf32>
    %294 = arith.mulf %292, %293 : vector<8x128xf32>
    %cst_114 = arith.constant 4.471500e-02 : f32
    %295 = vector.broadcast %cst_114 : f32 to vector<8x128xf32>
    %296 = arith.mulf %295, %294 : vector<8x128xf32>
    %297 = arith.addf %292, %296 : vector<8x128xf32>
    %cst_115 = arith.constant 0.797884583 : f32
    %298 = vector.broadcast %cst_115 : f32 to vector<8x128xf32>
    %299 = arith.mulf %298, %297 : vector<8x128xf32>
    %300 = math.tanh %299 : vector<8x128xf32>
    %cst_116 = arith.constant 1.000000e+00 : f32
    %301 = vector.broadcast %cst_116 : f32 to vector<8x128xf32>
    %302 = arith.addf %301, %300 : vector<8x128xf32>
    %cst_117 = arith.constant 5.000000e-01 : f32
    %303 = vector.broadcast %cst_117 : f32 to vector<8x128xf32>
    %304 = arith.mulf %303, %302 : vector<8x128xf32>
    %305 = arith.mulf %292, %304 : vector<8x128xf32>
    %306 = arith.truncf %305 : vector<8x128xf32> to vector<8x128xbf16>
    %c1_118 = arith.constant 1 : index
    %c0_119 = arith.constant 0 : index
    %c0_120 = arith.constant 0 : index
    %307 = vector.load %arg15[%c1_118, %c0_119, %c0_120] : memref<2x128x128xbf16, #tpu.memory_space<vmem>>, vector<1x128x128xbf16>
    %308 = vector.shape_cast %307 : vector<1x128x128xbf16> to vector<128x128xbf16>
    %cst_121 = arith.constant dense<0.000000e+00> : vector<8x128xf32>
    %309 = tpu.matmul %306, %308, %cst_121 {dimension_numbers = #tpu.dot_dimension_numbers<[1], [0], [0], [1], [0, 0, 1, 1], [], []>} : vector<8x128xbf16>, vector<128x128xbf16>, vector<8x128xf32> -> vector<8x128xf32>
    %c1_122 = arith.constant 1 : index
    %c0_123 = arith.constant 0 : index
    %c0_124 = arith.constant 0 : index
    %310 = vector.load %arg16[%c1_122, %c0_123, %c0_124] : memref<2x1x128xf32, #tpu.memory_space<vmem>>, vector<1x1x128xf32>
    %311 = vector.shape_cast %310 : vector<1x1x128xf32> to vector<1x128xf32>
    %312 = vector.broadcast %311 : vector<1x128xf32> to vector<8x128xf32>
    %313 = arith.addf %309, %312 : vector<8x128xf32>
    %314 = arith.addf %313, %284 : vector<8x128xf32>
    %c1_125 = arith.constant 1 : index
    %c0_126 = arith.constant 0 : index
    %c0_127 = arith.constant 0 : index
    %315 = vector.load %arg17[%c1_125, %c0_126, %c0_127] : memref<2x1x128xf32, #tpu.memory_space<vmem>>, vector<1x1x128xf32>
    %316 = vector.shape_cast %315 : vector<1x1x128xf32> to vector<1x128xf32>
    %c1_128 = arith.constant 1 : index
    %c0_129 = arith.constant 0 : index
    %c0_130 = arith.constant 0 : index
    %317 = vector.load %arg18[%c1_128, %c0_129, %c0_130] : memref<2x1x128xf32, #tpu.memory_space<vmem>>, vector<1x1x128xf32>
    %318 = vector.shape_cast %317 : vector<1x1x128xf32> to vector<1x128xf32>
    %cst_131 = arith.constant dense<0.000000e+00> : vector<8xf32>
    %319 = vector.multi_reduction <add>, %314, %cst_131 [1] : vector<8x128xf32> to vector<8xf32>
    %320 = vector.shape_cast %319 : vector<8xf32> to vector<8x1xf32>
    %cst_132 = arith.constant 3.125000e-02 : f32
    %321 = vector.broadcast %cst_132 : f32 to vector<8x1xf32>
    %322 = arith.mulf %320, %321 : vector<8x1xf32>
    %323 = vector.broadcast %322 : vector<8x1xf32> to vector<8x128xf32>
    %324 = arith.subf %314, %323 : vector<8x128xf32>
    %325 = vector.broadcast %1 : vector<1x128xf32> to vector<8x128xf32>
    %326 = arith.mulf %324, %325 : vector<8x128xf32>
    %327 = arith.mulf %326, %326 : vector<8x128xf32>
    %cst_133 = arith.constant dense<0.000000e+00> : vector<8xf32>
    %328 = vector.multi_reduction <add>, %327, %cst_133 [1] : vector<8x128xf32> to vector<8xf32>
    %329 = vector.shape_cast %328 : vector<8xf32> to vector<8x1xf32>
    %cst_134 = arith.constant 3.125000e-02 : f32
    %330 = vector.broadcast %cst_134 : f32 to vector<8x1xf32>
    %331 = arith.mulf %329, %330 : vector<8x1xf32>
    %cst_135 = arith.constant 9.99999996E-13 : f32
    %332 = vector.broadcast %cst_135 : f32 to vector<8x1xf32>
    %333 = arith.addf %331, %332 : vector<8x1xf32>
    %334 = math.rsqrt %333 : vector<8x1xf32>
    %335 = vector.broadcast %334 : vector<8x1xf32> to vector<8x128xf32>
    %336 = arith.mulf %326, %335 : vector<8x128xf32>
    %337 = vector.broadcast %316 : vector<1x128xf32> to vector<8x128xf32>
    %338 = arith.mulf %336, %337 : vector<8x128xf32>
    %339 = vector.broadcast %318 : vector<1x128xf32> to vector<8x128xf32>
    %340 = arith.addf %338, %339 : vector<8x128xf32>
    %341 = arith.truncf %340 : vector<8x128xf32> to vector<8x128xbf16>
    %c0_136 = arith.constant 0 : index
    %c0_137 = arith.constant 0 : index
    %342 = vector.load %arg19[%c0_136, %c0_137] : memref<128x128xbf16, #tpu.memory_space<vmem>>, vector<128x128xbf16>
    %cst_138 = arith.constant dense<0.000000e+00> : vector<8x128xf32>
    %343 = tpu.matmul %341, %342, %cst_138 {dimension_numbers = #tpu.dot_dimension_numbers<[1], [0], [0], [1], [0, 0, 1, 1], [], []>} : vector<8x128xbf16>, vector<128x128xbf16>, vector<8x128xf32> -> vector<8x128xf32>
    %c0_139 = arith.constant 0 : index
    %c0_140 = arith.constant 0 : index
    %344 = vector.load %arg20[%c0_139, %c0_140] : memref<1x128xf32, #tpu.memory_space<vmem>>, vector<1x128xf32>
    %345 = vector.broadcast %344 : vector<1x128xf32> to vector<8x128xf32>
    %346 = arith.addf %343, %345 : vector<8x128xf32>
    %347 = math.tanh %346 : vector<8x128xf32>
    %348 = arith.truncf %347 : vector<8x128xf32> to vector<8x128xbf16>
    %c0_141 = arith.constant 0 : index
    %c0_142 = arith.constant 0 : index
    %349 = vector.load %arg21[%c0_141, %c0_142] : memref<128x128xbf16, #tpu.memory_space<vmem>>, vector<128x128xbf16>
    %cst_143 = arith.constant dense<0.000000e+00> : vector<8x128xf32>
    %350 = tpu.matmul %348, %349, %cst_143 {dimension_numbers = #tpu.dot_dimension_numbers<[1], [0], [0], [1], [0, 0, 1, 1], [], []>} : vector<8x128xbf16>, vector<128x128xbf16>, vector<8x128xf32> -> vector<8x128xf32>
    %c0_144 = arith.constant 0 : index
    %c0_145 = arith.constant 0 : index
    %351 = vector.load %arg22[%c0_144, %c0_145] : memref<1x128xf32, #tpu.memory_space<vmem>>, vector<1x128xf32>
    %352 = vector.broadcast %351 : vector<1x128xf32> to vector<8x128xf32>
    %353 = arith.addf %350, %352 : vector<8x128xf32>
    %354 = vector.extract_strided_slice %353 {offsets = [0, 0], sizes = [1, 128], strides = [1, 1]} : vector<8x128xf32> to vector<1x128xf32>
    %c0_146 = arith.constant 0 : index
    %c0_147 = arith.constant 0 : index
    %c0_148 = arith.constant 0 : index
    %355 = vector.load %arg23[%c0_146, %c0_147, %c0_148] : memref<1x1x128xf32, #tpu.memory_space<vmem>>, vector<1x1x128xf32>
    %356 = vector.shape_cast %355 : vector<1x1x128xf32> to vector<1x128xf32>
    %357 = vector.shape_cast %354 : vector<1x128xf32> to vector<1x1x128xf32>
    tpu.vector_store %arg23[%c0_146, %c0_147, %c0_148], %357 {strides = array<i32>} : memref<1x1x128xf32, #tpu.memory_space<vmem>>, vector<1x1x128xf32>,
    return
  }
  func.func @transform_0(%arg0: i32) -> (i32, i32, i32) {
    %c0_i32 = arith.constant 0 : i32
    %c0_i32_0 = arith.constant 0 : i32
    %c0_i32_1 = arith.constant 0 : i32
    return %arg0, %c0_i32, %c0_i32_0 : i32, i32, i32
  }
  func.func @transform_1(%arg0: i32) -> (i32, i32, i32) {
    %c0_i32 = arith.constant 0 : i32
    %c0_i32_0 = arith.constant 0 : i32
    %c0_i32_1 = arith.constant 0 : i32
    return %arg0, %c0_i32, %c0_i32_0 : i32, i32, i32
  }
  func.func @transform_2(%arg0: i32) -> (i32, i32, i32) {
    %c0_i32 = arith.constant 0 : i32
    %c0_i32_0 = arith.constant 0 : i32
    %c0_i32_1 = arith.constant 0 : i32
    %c0_i32_2 = arith.constant 0 : i32
    return %c0_i32, %c0_i32_0, %c0_i32_1 : i32, i32, i32
  }
  func.func @transform_3(%arg0: i32) -> (i32, i32) {
    %c0_i32 = arith.constant 0 : i32
    %c0_i32_0 = arith.constant 0 : i32
    %c0_i32_1 = arith.constant 0 : i32
    return %c0_i32, %c0_i32_0 : i32, i32
  }
  func.func @transform_4(%arg0: i32) -> (i32, i32) {
    %c0_i32 = arith.constant 0 : i32
    %c0_i32_0 = arith.constant 0 : i32
    %c0_i32_1 = arith.constant 0 : i32
    return %c0_i32, %c0_i32_0 : i32, i32
  }
  func.func @transform_5(%arg0: i32) -> (i32, i32) {
    %c0_i32 = arith.constant 0 : i32
    %c0_i32_0 = arith.constant 0 : i32
    %c0_i32_1 = arith.constant 0 : i32
    return %c0_i32, %c0_i32_0 : i32, i32
  }
  func.func @transform_6(%arg0: i32) -> (i32, i32, i32) {
    %c0_i32 = arith.constant 0 : i32
    %c0_i32_0 = arith.constant 0 : i32
    %c0_i32_1 = arith.constant 0 : i32
    %c0_i32_2 = arith.constant 0 : i32
    return %c0_i32, %c0_i32_0, %c0_i32_1 : i32, i32, i32
  }
  func.func @transform_7(%arg0: i32) -> (i32, i32, i32) {
    %c0_i32 = arith.constant 0 : i32
    %c0_i32_0 = arith.constant 0 : i32
    %c0_i32_1 = arith.constant 0 : i32
    %c0_i32_2 = arith.constant 0 : i32
    return %c0_i32, %c0_i32_0, %c0_i32_1 : i32, i32, i32
  }
  func.func @transform_8(%arg0: i32) -> (i32, i32, i32) {
    %c0_i32 = arith.constant 0 : i32
    %c0_i32_0 = arith.constant 0 : i32
    %c0_i32_1 = arith.constant 0 : i32
    %c0_i32_2 = arith.constant 0 : i32
    return %c0_i32, %c0_i32_0, %c0_i32_1 : i32, i32, i32
  }
  func.func @transform_9(%arg0: i32) -> (i32, i32, i32) {
    %c0_i32 = arith.constant 0 : i32
    %c0_i32_0 = arith.constant 0 : i32
    %c0_i32_1 = arith.constant 0 : i32
    %c0_i32_2 = arith.constant 0 : i32
    return %c0_i32, %c0_i32_0, %c0_i32_1 : i32, i32, i32
  }
  func.func @transform_10(%arg0: i32) -> (i32, i32, i32) {
    %c0_i32 = arith.constant 0 : i32
    %c0_i32_0 = arith.constant 0 : i32
    %c0_i32_1 = arith.constant 0 : i32
    %c0_i32_2 = arith.constant 0 : i32
    return %c0_i32, %c0_i32_0, %c0_i32_1 : i32, i32, i32
  }
  func.func @transform_11(%arg0: i32) -> (i32, i32, i32) {
    %c0_i32 = arith.constant 0 : i32
    %c0_i32_0 = arith.constant 0 : i32
    %c0_i32_1 = arith.constant 0 : i32
    %c0_i32_2 = arith.constant 0 : i32
    return %c0_i32, %c0_i32_0, %c0_i32_1 : i32, i32, i32
  }
  func.func @transform_12(%arg0: i32) -> (i32, i32, i32) {
    %c0_i32 = arith.constant 0 : i32
    %c0_i32_0 = arith.constant 0 : i32
    %c0_i32_1 = arith.constant 0 : i32
    %c0_i32_2 = arith.constant 0 : i32
    return %c0_i32, %c0_i32_0, %c0_i32_1 : i32, i32, i32
  }
  func.func @transform_13(%arg0: i32) -> (i32, i32, i32) {
    %c0_i32 = arith.constant 0 : i32
    %c0_i32_0 = arith.constant 0 : i32
    %c0_i32_1 = arith.constant 0 : i32
    %c0_i32_2 = arith.constant 0 : i32
    return %c0_i32, %c0_i32_0, %c0_i32_1 : i32, i32, i32
  }
  func.func @transform_14(%arg0: i32) -> (i32, i32, i32) {
    %c0_i32 = arith.constant 0 : i32
    %c0_i32_0 = arith.constant 0 : i32
    %c0_i32_1 = arith.constant 0 : i32
    %c0_i32_2 = arith.constant 0 : i32
    return %c0_i32, %c0_i32_0, %c0_i32_1 : i32, i32, i32
  }
  func.func @transform_15(%arg0: i32) -> (i32, i32, i32) {
    %c0_i32 = arith.constant 0 : i32
    %c0_i32_0 = arith.constant 0 : i32
    %c0_i32_1 = arith.constant 0 : i32
    %c0_i32_2 = arith.constant 0 : i32
    return %c0_i32, %c0_i32_0, %c0_i32_1 : i32, i32, i32
  }
  func.func @transform_16(%arg0: i32) -> (i32, i32, i32) {
    %c0_i32 = arith.constant 0 : i32
    %c0_i32_0 = arith.constant 0 : i32
    %c0_i32_1 = arith.constant 0 : i32
    %c0_i32_2 = arith.constant 0 : i32
    return %c0_i32, %c0_i32_0, %c0_i32_1 : i32, i32, i32
  }
  func.func @transform_17(%arg0: i32) -> (i32, i32, i32) {
    %c0_i32 = arith.constant 0 : i32
    %c0_i32_0 = arith.constant 0 : i32
    %c0_i32_1 = arith.constant 0 : i32
    %c0_i32_2 = arith.constant 0 : i32
    return %c0_i32, %c0_i32_0, %c0_i32_1 : i32, i32, i32
  }
  func.func @transform_18(%arg0: i32) -> (i32, i32) {
    %c0_i32 = arith.constant 0 : i32
    %c0_i32_0 = arith.constant 0 : i32
    %c0_i32_1 = arith.constant 0 : i32
    return %c0_i32, %c0_i32_0 : i32, i32
  }
  func.func @transform_19(%arg0: i32) -> (i32, i32) {
    %c0_i32 = arith.constant 0 : i32
    %c0_i32_0 = arith.constant 0 : i32
    %c0_i32_1 = arith.constant 0 : i32
    return %c0_i32, %c0_i32_0 : i32, i32
  }
  func.func @transform_20(%arg0: i32) -> (i32, i32) {
    %c0_i32 = arith.constant 0 : i32
    %c0_i32_0 = arith.constant 0 : i32
    %c0_i32_1 = arith.constant 0 : i32
    return %c0_i32, %c0_i32_0 : i32, i32
  }
  func.func @transform_21(%arg0: i32) -> (i32, i32) {
    %c0_i32 = arith.constant 0 : i32
    %c0_i32_0 = arith.constant 0 : i32
    %c0_i32_1 = arith.constant 0 : i32
    return %c0_i32, %c0_i32_0 : i32, i32
  }
  func.func @transform_22(%arg0: i32) -> (i32, i32, i32) {
    %c0_i32 = arith.constant 0 : i32
    %c0_i32_0 = arith.constant 0 : i32
    %c0_i32_1 = arith.constant 0 : i32
    return %arg0, %c0_i32, %c0_i32_0 : i32, i32, i32
  }
}

</mosaic_0001>

<llo_original>
// kernel: sentimental_classifier_forward.1
$region0: #{sentimental_classifier_forward.1}
  #allocation0 [shape = 'u32[]', space=smem, size = 0x4, offset = 0x4, fixed_abs, tag = 'smem constant byte address 0x4 - core index']
  #allocation1 [shape = 'u32[72,128]{1,0:T(1,128)}', space=vmem, size = 0x9000, scoped, tag = 'internal scratch']
  %s0 = inlined_call_operand.vmem [shape: f32[2,8,128], index: 0, kind: input, shape index: {}]
  %s1 = inlined_call_operand.vmem [shape: f32[2,1,32], index: 1, kind: input, shape index: {}]
  %s2 = inlined_call_operand.vmem [shape: f32[4,1,128], index: 2, kind: input, shape index: {}]
  %s3 = inlined_call_operand.vmem [shape: bf16[32,32], index: 3, kind: input, shape index: {}]
  %s4 = inlined_call_operand.vmem [shape: f32[1,128], index: 4, kind: input, shape index: {}]
  %s5 = inlined_call_operand.vmem [shape: f32[1,128], index: 5, kind: input, shape index: {}]
  %s6 = inlined_call_operand.hbm [shape: bf16[2,128,384], index: 6, kind: input, shape index: {}]
  %s7 = inlined_call_operand.vmem [shape: f32[2,1,384], index: 7, kind: input, shape index: {}]
  %s8 = inlined_call_operand.vmem [shape: bf16[2,128,128], index: 8, kind: input, shape index: {}]
  %s9 = inlined_call_operand.vmem [shape: f32[2,1,128], index: 9, kind: input, shape index: {}]
  %s10 = inlined_call_operand.vmem [shape: f32[2,1,128], index: 10, kind: input, shape index: {}]
  %s11 = inlined_call_operand.vmem [shape: f32[2,1,128], index: 11, kind: input, shape index: {}]
  %s12 = inlined_call_operand.vmem [shape: bf16[2,128,128], index: 12, kind: input, shape index: {}]
  %s13 = inlined_call_operand.vmem [shape: f32[2,1,128], index: 13, kind: input, shape index: {}]
  %s14 = inlined_call_operand.hbm [shape: bf16[2,128,128], index: 14, kind: input, shape index: {}]
  %s15 = inlined_call_operand.vmem [shape: f32[2,1,128], index: 15, kind: input, shape index: {}]
  %s16 = inlined_call_operand.vmem [shape: f32[2,1,128], index: 16, kind: input, shape index: {}]
  %s17 = inlined_call_operand.vmem [shape: f32[2,1,128], index: 17, kind: input, shape index: {}]
  %s18 = inlined_call_operand.vmem [shape: bf16[128,128], index: 18, kind: input, shape index: {}]
  %s19 = inlined_call_operand.vmem [shape: f32[1,128], index: 19, kind: input, shape index: {}]
  %s20 = inlined_call_operand.vmem [shape: bf16[128,128], index: 20, kind: input, shape index: {}]
  %s21 = inlined_call_operand.vmem [shape: f32[1,128], index: 21, kind: input, shape index: {}]
  %s22 = inlined_call_operand.hbm [shape: f32[2,1,128], index: 22, kind: output, shape index: {}]
  %s23 = sld [smem:[#allocation0]]
  $region129: #{sentimental_classifier_forward.1} parent=0
    _
  %s25 = ssub.s32 1, %s23
  %s26 = scalar_select 0, %s25, %s23
  $region1: #{sentimental_classifier_forward.1} parent=0
    #allocation2 [shape = 'u8[196608]{0}', space=vmem, size = 0x30000, scoped, tag = 'input window, operand 6, single buffered']
    #allocation3 [shape = 's32[2]{0}', space=sflag, size = 0x8, scoped, tag = 'scoped memory for sentimental_classifier_forward.1']
    #allocation4 [shape = 's32[2]{0}', space=sflag, size = 0x8, scoped, tag = 'scoped memory for sentimental_classifier_forward.1']
    #allocation5 [shape = 'u8[65536]{0}', space=vmem, size = 0x10000, scoped, tag = 'input window, operand 14, single buffered']
    #allocation6 [shape = 's32[1]{0}', space=sflag, size = 0x4, scoped, tag = 'scoped memory for sentimental_classifier_forward.1']
    #allocation7 [shape = 'u8[1024]{0}', space=vmem, size = 0x400, scoped, tag = 'output window, operand 0']
    %27 = vsyncpa [#allocation3], 0
    %28 = vsyncpa [#allocation6], 0
    %29 = vsyncpa [#allocation4], 0
    %s30 = scalar_lea.sflag [#allocation4], 1
    %31 = vsyncpa %s30, 0
    loop: start=0, step=1, limit=4
    $region2: #{sentimental_classifier_forward.1} parent=1 // loop_pre_header
      _
    $region3: #{sentimental_classifier_forward.1} parent=1 // loop_header
      %s33 = sphi 0, %s37
      %p34 = scmp.ge.s32.totalorder %s33, 4
      %s43 = sphi 0, %s45
      %s46 = sphi 0, %s43
      %s47 = sphi 0, %s46
      %s63 = sphi 0, %s47
      %s69 = sphi 0, %s71
      %s72 = sphi 0, %s69
      %s73 = sphi 0, %s72
      %s89 = sphi 0, %s73
      %s93 = sphi 0, %s93
      %s95 = sphi 0, %s93
      %s96 = sphi 0, %s95
      %s110 = sphi 0, %s96
      %s114 = sphi 0, %s114
      %s116 = sphi 0, %s114
      %s117 = sphi 0, %s116
      %s131 = sphi 0, %s117
      %s135 = sphi 0, %s135
      %s137 = sphi 0, %s135
      %s138 = sphi 0, %s137
      %s152 = sphi 0, %s138
      %s156 = sphi 0, %s156
      %s158 = sphi 0, %s156
      %s159 = sphi 0, %s158
      %s173 = sphi 0, %s159
      %s177 = sphi 0, %s177
      %s179 = sphi 0, %s177
      %s180 = sphi 0, %s179
      %s194 = sphi 0, %s180
      %s198 = sphi 0, %s198
      %s200 = sphi 0, %s198
      %s201 = sphi 0, %s200
      %s215 = sphi 0, %s201
      %s219 = sphi 0, %s219
      %s221 = sphi 0, %s219
      %s222 = sphi 0, %s221
      %s236 = sphi 0, %s222
      %s240 = sphi 0, %s240
      %s242 = sphi 0, %s240
      %s243 = sphi 0, %s242
      %s257 = sphi 0, %s243
      %s261 = sphi 0, %s261
      %s263 = sphi 0, %s261
      %s264 = sphi 0, %s263
      %s278 = sphi 0, %s264
      %s282 = sphi 0, %s282
      %s284 = sphi 0, %s282
      %s285 = sphi 0, %s284
      %s299 = sphi 0, %s285
      %s303 = sphi 0, %s303
      %s305 = sphi 0, %s303
      %s306 = sphi 0, %s305
      %s320 = sphi 0, %s306
      %s324 = sphi 0, %s324
      %s326 = sphi 0, %s324
      %s327 = sphi 0, %s326
      %s341 = sphi 0, %s327
      %s345 = sphi 0, %s345
      %s347 = sphi 0, %s345
      %s348 = sphi 0, %s347
      %s362 = sphi 0, %s348
      %s366 = sphi 0, %s366
      %s368 = sphi 0, %s366
      %s369 = sphi 0, %s368
      %s383 = sphi 0, %s369
      %s387 = sphi 0, %s387
      %s389 = sphi 0, %s387
      %s390 = sphi 0, %s389
      %s404 = sphi 0, %s390
      %s408 = sphi 0, %s408
      %s410 = sphi 0, %s408
      %s411 = sphi 0, %s410
      %s425 = sphi 0, %s411
      %s429 = sphi 0, %s429
      %s431 = sphi 0, %s429
      %s432 = sphi 0, %s431
      %s446 = sphi 0, %s432
      %s450 = sphi 0, %s450
      %s452 = sphi 0, %s450
      %s453 = sphi 0, %s452
      %s467 = sphi 0, %s453
      %s471 = sphi 0, %s471
      %s473 = sphi 0, %s471
      %s474 = sphi 0, %s473
      %s488 = sphi 0, %s474
      %s492 = sphi 0, %s492
      %s494 = sphi 0, %s492
      %s495 = sphi 0, %s494
      %s509 = sphi 0, %s495
      %s515 = sphi 0, %s517
      %s518 = sphi 0, %s515
      %s519 = sphi 0, %s518
      %s535 = sphi 0, %s519
    $region4: #{sentimental_classifier_forward.1} parent=1 // loop_header_branch
      %36 = sbr.rel (%p34) target = $region8
    $region5: #{sentimental_classifier_forward.1} parent=1 // loop_body
      %s38 = ssub.s32 %s33, 1
      %s39 = ssub.s32 %s33, 2
      %s40 = sadd.s32 %s33, 1
      %s41 = ssub.s32 %s33, %s40
      %p42 = scmp.eq.s32.totalorder %s41, 0
      %s44 = sadd.s32 %s43, 1
      %s45 = scalar_select %p42, %s43, %s44
      %p48 = pneg %p42
      %p49 = scmp.eq.s32.totalorder %s33, 1
      %p50 = por %p48, %p49
      %p51 = scmp.ne.s32.totalorder %s43, %s46
      %p52 = scmp.eq.s32.totalorder %s33, 0
      %p53 = por %p51, %p52
      %p54 = scmp.ne.s32.totalorder %s43, %s46
      %p55 = scmp.eq.s32.totalorder %s38, 1
      %p56 = por %p54, %p55
      %p57 = scmp.ne.s32.totalorder %s46, %s47
      %p58 = scmp.eq.s32.totalorder %s38, 0
      %p59 = por %p57, %p58
      %p60 = scmp.ne.s32.totalorder %s46, %s47
      %p61 = scmp.eq.s32.totalorder %s39, 1
      %p62 = por %p60, %p61
      %p64 = scmp.ne.s32.totalorder %s47, %s63
      %p65 = scmp.eq.s32.totalorder %s39, 0
      %p66 = por %p64, %p65
      %s67 = ssub.s32 %s33, %s40
      %p68 = scmp.eq.s32.totalorder %s67, 0
      %s70 = sadd.s32 %s69, 1
      %s71 = scalar_select %p68, %s69, %s70
      %p74 = pneg %p68
      %p75 = scmp.eq.s32.totalorder %s33, 1
      %p76 = por %p74, %p75
      %p77 = scmp.ne.s32.totalorder %s69, %s72
      %p78 = scmp.eq.s32.totalorder %s33, 0
      %p79 = por %p77, %p78
      %p80 = scmp.ne.s32.totalorder %s69, %s72
      %p81 = scmp.eq.s32.totalorder %s38, 1
      %p82 = por %p80, %p81
      %p83 = scmp.ne.s32.totalorder %s72, %s73
      %p84 = scmp.eq.s32.totalorder %s38, 0
      %p85 = por %p83, %p84
      %p86 = scmp.ne.s32.totalorder %s72, %s73
      %p87 = scmp.eq.s32.totalorder %s39, 1
      %p88 = por %p86, %p87
      %p90 = scmp.ne.s32.totalorder %s73, %s89
      %p91 = scmp.eq.s32.totalorder %s39, 0
      %p92 = por %p90, %p91
      %s94 = sadd.s32 %s93, 1
      %p97 = scmp.eq.s32.totalorder %s33, 1
      %p98 = scmp.ne.s32.totalorder %s93, %s95
      %p99 = scmp.eq.s32.totalorder %s33, 0
      %p100 = por %p98, %p99
      %p101 = scmp.ne.s32.totalorder %s93, %s95
      %p102 = scmp.eq.s32.totalorder %s38, 1
      %p103 = por %p101, %p102
      %p104 = scmp.ne.s32.totalorder %s95, %s96
      %p105 = scmp.eq.s32.totalorder %s38, 0
      %p106 = por %p104, %p105
      %p107 = scmp.ne.s32.totalorder %s95, %s96
      %p108 = scmp.eq.s32.totalorder %s39, 1
      %p109 = por %p107, %p108
      %p111 = scmp.ne.s32.totalorder %s96, %s110
      %p112 = scmp.eq.s32.totalorder %s39, 0
      %p113 = por %p111, %p112
      %s115 = sadd.s32 %s114, 1
      %p118 = scmp.eq.s32.totalorder %s33, 1
      %p119 = scmp.ne.s32.totalorder %s114, %s116
      %p120 = scmp.eq.s32.totalorder %s33, 0
      %p121 = por %p119, %p120
      %p122 = scmp.ne.s32.totalorder %s114, %s116
      %p123 = scmp.eq.s32.totalorder %s38, 1
      %p124 = por %p122, %p123
      %p125 = scmp.ne.s32.totalorder %s116, %s117
      %p126 = scmp.eq.s32.totalorder %s38, 0
      %p127 = por %p125, %p126
      %p128 = scmp.ne.s32.totalorder %s116, %s117
      %p129 = scmp.eq.s32.totalorder %s39, 1
      %p130 = por %p128, %p129
      %p132 = scmp.ne.s32.totalorder %s117, %s131
      %p133 = scmp.eq.s32.totalorder %s39, 0
      %p134 = por %p132, %p133
      %s136 = sadd.s32 %s135, 1
      %p139 = scmp.eq.s32.totalorder %s33, 1
      %p140 = scmp.ne.s32.totalorder %s135, %s137
      %p141 = scmp.eq.s32.totalorder %s33, 0
      %p142 = por %p140, %p141
      %p143 = scmp.ne.s32.totalorder %s135, %s137
      %p144 = scmp.eq.s32.totalorder %s38, 1
      %p145 = por %p143, %p144
      %p146 = scmp.ne.s32.totalorder %s137, %s138
      %p147 = scmp.eq.s32.totalorder %s38, 0
      %p148 = por %p146, %p147
      %p149 = scmp.ne.s32.totalorder %s137, %s138
      %p150 = scmp.eq.s32.totalorder %s39, 1
      %p151 = por %p149, %p150
      %p153 = scmp.ne.s32.totalorder %s138, %s152
      %p154 = scmp.eq.s32.totalorder %s39, 0
      %p155 = por %p153, %p154
      %s157 = sadd.s32 %s156, 1
      %p160 = scmp.eq.s32.totalorder %s33, 1
      %p161 = scmp.ne.s32.totalorder %s156, %s158
      %p162 = scmp.eq.s32.totalorder %s33, 0
      %p163 = por %p161, %p162
      %p164 = scmp.ne.s32.totalorder %s156, %s158
      %p165 = scmp.eq.s32.totalorder %s38, 1
      %p166 = por %p164, %p165
      %p167 = scmp.ne.s32.totalorder %s158, %s159
      %p168 = scmp.eq.s32.totalorder %s38, 0
      %p169 = por %p167, %p168
      %p170 = scmp.ne.s32.totalorder %s158, %s159
      %p171 = scmp.eq.s32.totalorder %s39, 1
      %p172 = por %p170, %p171
      %p174 = scmp.ne.s32.totalorder %s159, %s173
      %p175 = scmp.eq.s32.totalorder %s39, 0
      %p176 = por %p174, %p175
      %s178 = sadd.s32 %s177, 1
      %p181 = scmp.eq.s32.totalorder %s33, 1
      %p182 = scmp.ne.s32.totalorder %s177, %s179
      %p183 = scmp.eq.s32.totalorder %s33, 0
      %p184 = por %p182, %p183
      %p185 = scmp.ne.s32.totalorder %s177, %s179
      %p186 = scmp.eq.s32.totalorder %s38, 1
      %p187 = por %p185, %p186
      %p188 = scmp.ne.s32.totalorder %s179, %s180
      %p189 = scmp.eq.s32.totalorder %s38, 0
      %p190 = por %p188, %p189
      %p191 = scmp.ne.s32.totalorder %s179, %s180
      %p192 = scmp.eq.s32.totalorder %s39, 1
      %p193 = por %p191, %p192
      %p195 = scmp.ne.s32.totalorder %s180, %s194
      %p196 = scmp.eq.s32.totalorder %s39, 0
      %p197 = por %p195, %p196
      %s199 = sadd.s32 %s198, 1
      %p202 = scmp.eq.s32.totalorder %s33, 1
      %p203 = scmp.ne.s32.totalorder %s198, %s200
      %p204 = scmp.eq.s32.totalorder %s33, 0
      %p205 = por %p203, %p204
      %p206 = scmp.ne.s32.totalorder %s198, %s200
      %p207 = scmp.eq.s32.totalorder %s38, 1
      %p208 = por %p206, %p207
      %p209 = scmp.ne.s32.totalorder %s200, %s201
      %p210 = scmp.eq.s32.totalorder %s38, 0
      %p211 = por %p209, %p210
      %p212 = scmp.ne.s32.totalorder %s200, %s201
      %p213 = scmp.eq.s32.totalorder %s39, 1
      %p214 = por %p212, %p213
      %p216 = scmp.ne.s32.totalorder %s201, %s215
      %p217 = scmp.eq.s32.totalorder %s39, 0
      %p218 = por %p216, %p217
      %s220 = sadd.s32 %s219, 1
      %p223 = scmp.eq.s32.totalorder %s33, 1
      %p224 = scmp.ne.s32.totalorder %s219, %s221
      %p225 = scmp.eq.s32.totalorder %s33, 0
      %p226 = por %p224, %p225
      %p227 = scmp.ne.s32.totalorder %s219, %s221
      %p228 = scmp.eq.s32.totalorder %s38, 1
      %p229 = por %p227, %p228
      %p230 = scmp.ne.s32.totalorder %s221, %s222
      %p231 = scmp.eq.s32.totalorder %s38, 0
      %p232 = por %p230, %p231
      %p233 = scmp.ne.s32.totalorder %s221, %s222
      %p234 = scmp.eq.s32.totalorder %s39, 1
      %p235 = por %p233, %p234
      %p237 = scmp.ne.s32.totalorder %s222, %s236
      %p238 = scmp.eq.s32.totalorder %s39, 0
      %p239 = por %p237, %p238
      %s241 = sadd.s32 %s240, 1
      %p244 = scmp.eq.s32.totalorder %s33, 1
      %p245 = scmp.ne.s32.totalorder %s240, %s242
      %p246 = scmp.eq.s32.totalorder %s33, 0
      %p247 = por %p245, %p246
      %p248 = scmp.ne.s32.totalorder %s240, %s242
      %p249 = scmp.eq.s32.totalorder %s38, 1
      %p250 = por %p248, %p249
      %p251 = scmp.ne.s32.totalorder %s242, %s243
      %p252 = scmp.eq.s32.totalorder %s38, 0
      %p253 = por %p251, %p252
      %p254 = scmp.ne.s32.totalorder %s242, %s243
      %p255 = scmp.eq.s32.totalorder %s39, 1
      %p256 = por %p254, %p255
      %p258 = scmp.ne.s32.totalorder %s243, %s257
      %p259 = scmp.eq.s32.totalorder %s39, 0
      %p260 = por %p258, %p259
      %s262 = sadd.s32 %s261, 1
      %p265 = scmp.eq.s32.totalorder %s33, 1
      %p266 = scmp.ne.s32.totalorder %s261, %s263
      %p267 = scmp.eq.s32.totalorder %s33, 0
      %p268 = por %p266, %p267
      %p269 = scmp.ne.s32.totalorder %s261, %s263
      %p270 = scmp.eq.s32.totalorder %s38, 1
      %p271 = por %p269, %p270
      %p272 = scmp.ne.s32.totalorder %s263, %s264
      %p273 = scmp.eq.s32.totalorder %s38, 0
      %p274 = por %p272, %p273
      %p275 = scmp.ne.s32.totalorder %s263, %s264
      %p276 = scmp.eq.s32.totalorder %s39, 1
      %p277 = por %p275, %p276
      %p279 = scmp.ne.s32.totalorder %s264, %s278
      %p280 = scmp.eq.s32.totalorder %s39, 0
      %p281 = por %p279, %p280
      %s283 = sadd.s32 %s282, 1
      %p286 = scmp.eq.s32.totalorder %s33, 1
      %p287 = scmp.ne.s32.totalorder %s282, %s284
      %p288 = scmp.eq.s32.totalorder %s33, 0
      %p289 = por %p287, %p288
      %p290 = scmp.ne.s32.totalorder %s282, %s284
      %p291 = scmp.eq.s32.totalorder %s38, 1
      %p292 = por %p290, %p291
      %p293 = scmp.ne.s32.totalorder %s284, %s285
      %p294 = scmp.eq.s32.totalorder %s38, 0
      %p295 = por %p293, %p294
      %p296 = scmp.ne.s32.totalorder %s284, %s285
      %p297 = scmp.eq.s32.totalorder %s39, 1
      %p298 = por %p296, %p297
      %p300 = scmp.ne.s32.totalorder %s285, %s299
      %p301 = scmp.eq.s32.totalorder %s39, 0
      %p302 = por %p300, %p301
      %s304 = sadd.s32 %s303, 1
      %p307 = scmp.eq.s32.totalorder %s33, 1
      %p308 = scmp.ne.s32.totalorder %s303, %s305
      %p309 = scmp.eq.s32.totalorder %s33, 0
      %p310 = por %p308, %p309
      %p311 = scmp.ne.s32.totalorder %s303, %s305
      %p312 = scmp.eq.s32.totalorder %s38, 1
      %p313 = por %p311, %p312
      %p314 = scmp.ne.s32.totalorder %s305, %s306
      %p315 = scmp.eq.s32.totalorder %s38, 0
      %p316 = por %p314, %p315
      %p317 = scmp.ne.s32.totalorder %s305, %s306
      %p318 = scmp.eq.s32.totalorder %s39, 1
      %p319 = por %p317, %p318
      %p321 = scmp.ne.s32.totalorder %s306, %s320
      %p322 = scmp.eq.s32.totalorder %s39, 0
      %p323 = por %p321, %p322
      %s325 = sadd.s32 %s324, 1
      %p328 = scmp.eq.s32.totalorder %s33, 1
      %p329 = scmp.ne.s32.totalorder %s324, %s326
      %p330 = scmp.eq.s32.totalorder %s33, 0
      %p331 = por %p329, %p330
      %p332 = scmp.ne.s32.totalorder %s324, %s326
      %p333 = scmp.eq.s32.totalorder %s38, 1
      %p334 = por %p332, %p333
      %p335 = scmp.ne.s32.totalorder %s326, %s327
      %p336 = scmp.eq.s32.totalorder %s38, 0
      %p337 = por %p335, %p336
      %p338 = scmp.ne.s32.totalorder %s326, %s327
      %p339 = scmp.eq.s32.totalorder %s39, 1
      %p340 = por %p338, %p339
      %p342 = scmp.ne.s32.totalorder %s327, %s341
      %p343 = scmp.eq.s32.totalorder %s39, 0
      %p344 = por %p342, %p343
      %s346 = sadd.s32 %s345, 1
      %p349 = scmp.eq.s32.totalorder %s33, 1
      %p350 = scmp.ne.s32.totalorder %s345, %s347
      %p351 = scmp.eq.s32.totalorder %s33, 0
      %p352 = por %p350, %p351
      %p353 = scmp.ne.s32.totalorder %s345, %s347
      %p354 = scmp.eq.s32.totalorder %s38, 1
      %p355 = por %p353, %p354
      %p356 = scmp.ne.s32.totalorder %s347, %s348
      %p357 = scmp.eq.s32.totalorder %s38, 0
      %p358 = por %p356, %p357
      %p359 = scmp.ne.s32.totalorder %s347, %s348
      %p360 = scmp.eq.s32.totalorder %s39, 1
      %p361 = por %p359, %p360
      %p363 = scmp.ne.s32.totalorder %s348, %s362
      %p364 = scmp.eq.s32.totalorder %s39, 0
      %p365 = por %p363, %p364
      %s367 = sadd.s32 %s366, 1
      %p370 = scmp.eq.s32.totalorder %s33, 1
      %p371 = scmp.ne.s32.totalorder %s366, %s368
      %p372 = scmp.eq.s32.totalorder %s33, 0
      %p373 = por %p371, %p372
      %p374 = scmp.ne.s32.totalorder %s366, %s368
      %p375 = scmp.eq.s32.totalorder %s38, 1
      %p376 = por %p374, %p375
      %p377 = scmp.ne.s32.totalorder %s368, %s369
      %p378 = scmp.eq.s32.totalorder %s38, 0
      %p379 = por %p377, %p378
      %p380 = scmp.ne.s32.totalorder %s368, %s369
      %p381 = scmp.eq.s32.totalorder %s39, 1
      %p382 = por %p380, %p381
      %p384 = scmp.ne.s32.totalorder %s369, %s383
      %p385 = scmp.eq.s32.totalorder %s39, 0
      %p386 = por %p384, %p385
      %s388 = sadd.s32 %s387, 1
      %p391 = scmp.eq.s32.totalorder %s33, 1
      %p392 = scmp.ne.s32.totalorder %s387, %s389
      %p393 = scmp.eq.s32.totalorder %s33, 0
      %p394 = por %p392, %p393
      %p395 = scmp.ne.s32.totalorder %s387, %s389
      %p396 = scmp.eq.s32.totalorder %s38, 1
      %p397 = por %p395, %p396
      %p398 = scmp.ne.s32.totalorder %s389, %s390
      %p399 = scmp.eq.s32.totalorder %s38, 0
      %p400 = por %p398, %p399
      %p401 = scmp.ne.s32.totalorder %s389, %s390
      %p402 = scmp.eq.s32.totalorder %s39, 1
      %p403 = por %p401, %p402
      %p405 = scmp.ne.s32.totalorder %s390, %s404
      %p406 = scmp.eq.s32.totalorder %s39, 0
      %p407 = por %p405, %p406
      %s409 = sadd.s32 %s408, 1
      %p412 = scmp.eq.s32.totalorder %s33, 1
      %p413 = scmp.ne.s32.totalorder %s408, %s410
      %p414 = scmp.eq.s32.totalorder %s33, 0
      %p415 = por %p413, %p414
      %p416 = scmp.ne.s32.totalorder %s408, %s410
      %p417 = scmp.eq.s32.totalorder %s38, 1
      %p418 = por %p416, %p417
      %p419 = scmp.ne.s32.totalorder %s410, %s411
      %p420 = scmp.eq.s32.totalorder %s38, 0
      %p421 = por %p419, %p420
      %p422 = scmp.ne.s32.totalorder %s410, %s411
      %p423 = scmp.eq.s32.totalorder %s39, 1
      %p424 = por %p422, %p423
      %p426 = scmp.ne.s32.totalorder %s411, %s425
      %p427 = scmp.eq.s32.totalorder %s39, 0
      %p428 = por %p426, %p427
      %s430 = sadd.s32 %s429, 1
      %p433 = scmp.eq.s32.totalorder %s33, 1
      %p434 = scmp.ne.s32.totalorder %s429, %s431
      %p435 = scmp.eq.s32.totalorder %s33, 0
      %p436 = por %p434, %p435
      %p437 = scmp.ne.s32.totalorder %s429, %s431
      %p438 = scmp.eq.s32.totalorder %s38, 1
      %p439 = por %p437, %p438
      %p440 = scmp.ne.s32.totalorder %s431, %s432
      %p441 = scmp.eq.s32.totalorder %s38, 0
      %p442 = por %p440, %p441
      %p443 = scmp.ne.s32.totalorder %s431, %s432
      %p444 = scmp.eq.s32.totalorder %s39, 1
      %p445 = por %p443, %p444
      %p447 = scmp.ne.s32.totalorder %s432, %s446
      %p448 = scmp.eq.s32.totalorder %s39, 0
      %p449 = por %p447, %p448
      %s451 = sadd.s32 %s450, 1
      %p454 = scmp.eq.s32.totalorder %s33, 1
      %p455 = scmp.ne.s32.totalorder %s450, %s452
      %p456 = scmp.eq.s32.totalorder %s33, 0
      %p457 = por %p455, %p456
      %p458 = scmp.ne.s32.totalorder %s450, %s452
      %p459 = scmp.eq.s32.totalorder %s38, 1
      %p460 = por %p458, %p459
      %p461 = scmp.ne.s32.totalorder %s452, %s453
      %p462 = scmp.eq.s32.totalorder %s38, 0
      %p463 = por %p461, %p462
      %p464 = scmp.ne.s32.totalorder %s452, %s453
      %p465 = scmp.eq.s32.totalorder %s39, 1
      %p466 = por %p464, %p465
      %p468 = scmp.ne.s32.totalorder %s453, %s467
      %p469 = scmp.eq.s32.totalorder %s39, 0
      %p470 = por %p468, %p469
      %s472 = sadd.s32 %s471, 1
      %p475 = scmp.eq.s32.totalorder %s33, 1
      %p476 = scmp.ne.s32.totalorder %s471, %s473
      %p477 = scmp.eq.s32.totalorder %s33, 0
      %p478 = por %p476, %p477
      %p479 = scmp.ne.s32.totalorder %s471, %s473
      %p480 = scmp.eq.s32.totalorder %s38, 1
      %p481 = por %p479, %p480
      %p482 = scmp.ne.s32.totalorder %s473, %s474
      %p483 = scmp.eq.s32.totalorder %s38, 0
      %p484 = por %p482, %p483
      %p485 = scmp.ne.s32.totalorder %s473, %s474
      %p486 = scmp.eq.s32.totalorder %s39, 1
      %p487 = por %p485, %p486
      %p489 = scmp.ne.s32.totalorder %s474, %s488
      %p490 = scmp.eq.s32.totalorder %s39, 0
      %p491 = por %p489, %p490
      %s493 = sadd.s32 %s492, 1
      %p496 = scmp.eq.s32.totalorder %s33, 1
      %p497 = scmp.ne.s32.totalorder %s492, %s494
      %p498 = scmp.eq.s32.totalorder %s33, 0
      %p499 = por %p497, %p498
      %p500 = scmp.ne.s32.totalorder %s492, %s494
      %p501 = scmp.eq.s32.totalorder %s38, 1
      %p502 = por %p500, %p501
      %p503 = scmp.ne.s32.totalorder %s494, %s495
      %p504 = scmp.eq.s32.totalorder %s38, 0
      %p505 = por %p503, %p504
      %p506 = scmp.ne.s32.totalorder %s494, %s495
      %p507 = scmp.eq.s32.totalorder %s39, 1
      %p508 = por %p506, %p507
      %p510 = scmp.ne.s32.totalorder %s495, %s509
      %p511 = scmp.eq.s32.totalorder %s39, 0
      %p512 = por %p510, %p511
      %s513 = ssub.s32 %s33, %s40
      %p514 = scmp.eq.s32.totalorder %s513, 0
      %s516 = sadd.s32 %s515, 1
      %s517 = scalar_select %p514, %s515, %s516
      %p520 = pneg %p514
      %p521 = scmp.eq.s32.totalorder %s33, 1
      %p522 = por %p520, %p521
      %p523 = scmp.ne.s32.totalorder %s515, %s518
      %p524 = scmp.eq.s32.totalorder %s33, 0
      %p525 = por %p523, %p524
      %p526 = scmp.ne.s32.totalorder %s515, %s518
      %p527 = scmp.eq.s32.totalorder %s38, 1
      %p528 = por %p526, %p527
      %p529 = scmp.ne.s32.totalorder %s518, %s519
      %p530 = scmp.eq.s32.totalorder %s38, 0
      %p531 = por %p529, %p530
      %p532 = scmp.ne.s32.totalorder %s518, %s519
      %p533 = scmp.eq.s32.totalorder %s39, 1
      %p534 = por %p532, %p533
      %p536 = scmp.ne.s32.totalorder %s519, %s535
      %p537 = scmp.eq.s32.totalorder %s39, 0
      %p538 = por %p536, %p537
      %p539 = scmp.le.s32.totalorder 1, %s33
      %p540 = scmp.lt.s32.totalorder %s33, 3
      %p541 = pnand %p539, %p540
      %p542 = pneg %p541
      // Predicated region
      $region9: #{sentimental_classifier_forward.1} parent=5 // pred_check
        _
      $region10: #{sentimental_classifier_forward.1} parent=5 // pred_check_branch
        %544 = sbr.rel (%p541) target = $region12
      $region11: #{sentimental_classifier_forward.1} parent=5 // pred_region
        %s545 = ssub.s32 %s33, 1
        // Predicated region
        $region13: #{sentimental_classifier_forward.1} parent=11 // pred_check
          %p546 = pneg %p106
        $region14: #{sentimental_classifier_forward.1} parent=11 // pred_check_branch
          %548 = sbr.rel (%p546) target = $region16
        $region15: #{sentimental_classifier_forward.1} parent=11 // pred_region
          _
        $region16: #{sentimental_classifier_forward.1} parent=11 // pred_fallthru
          _
        // Predicated region
        $region17: #{sentimental_classifier_forward.1} parent=11 // pred_check
          %p549 = pneg %p127
        $region18: #{sentimental_classifier_forward.1} parent=11 // pred_check_branch
          %551 = sbr.rel (%p549) target = $region20
        $region19: #{sentimental_classifier_forward.1} parent=11 // pred_region
          _
        $region20: #{sentimental_classifier_forward.1} parent=11 // pred_fallthru
          _
        // Predicated region
        $region21: #{sentimental_classifier_forward.1} parent=11 // pred_check
          %p552 = pneg %p148
        $region22: #{sentimental_classifier_forward.1} parent=11 // pred_check_branch
          %554 = sbr.rel (%p552) target = $region24
        $region23: #{sentimental_classifier_forward.1} parent=11 // pred_region
          _
        $region24: #{sentimental_classifier_forward.1} parent=11 // pred_fallthru
          _
        // Predicated region
        $region25: #{sentimental_classifier_forward.1} parent=11 // pred_check
          %p555 = pneg %p169
        $region26: #{sentimental_classifier_forward.1} parent=11 // pred_check_branch
          %557 = sbr.rel (%p555) target = $region28
        $region27: #{sentimental_classifier_forward.1} parent=11 // pred_region
          _
        $region28: #{sentimental_classifier_forward.1} parent=11 // pred_fallthru
          _
        // Predicated region
        $region29: #{sentimental_classifier_forward.1} parent=11 // pred_check
          %p558 = pneg %p190
        $region30: #{sentimental_classifier_forward.1} parent=11 // pred_check_branch
          %560 = sbr.rel (%p558) target = $region32
        $region31: #{sentimental_classifier_forward.1} parent=11 // pred_region
          %562 = vsyncadd [#allocation3], 0
          %s563 = sshll.u32 %s6, 4
          %s564 = int_to_ptr.hbm [resolvable:$true] %s563
          %s565 = sshll.u32 [#allocation2], 4
          %s566 = int_to_ptr.vmem [resolvable:$true] %s565
          %571 = dma.hbm_to_vmem [thread:$0]  %s564, 6144, %s566, [#allocation3], 192, 192, 12
        $region32: #{sentimental_classifier_forward.1} parent=11 // pred_fallthru
          _
        // Predicated region
        $region33: #{sentimental_classifier_forward.1} parent=11 // pred_check
          %p572 = pneg %p211
        $region34: #{sentimental_classifier_forward.1} parent=11 // pred_check_branch
          %574 = sbr.rel (%p572) target = $region36
        $region35: #{sentimental_classifier_forward.1} parent=11 // pred_region
          _
        $region36: #{sentimental_classifier_forward.1} parent=11 // pred_fallthru
          _
        // Predicated region
        $region37: #{sentimental_classifier_forward.1} parent=11 // pred_check
          %p575 = pneg %p232
        $region38: #{sentimental_classifier_forward.1} parent=11 // pred_check_branch
          %577 = sbr.rel (%p575) target = $region40
        $region39: #{sentimental_classifier_forward.1} parent=11 // pred_region
          _
        $region40: #{sentimental_classifier_forward.1} parent=11 // pred_fallthru
          _
        // Predicated region
        $region41: #{sentimental_classifier_forward.1} parent=11 // pred_check
          %p578 = pneg %p253
        $region42: #{sentimental_classifier_forward.1} parent=11 // pred_check_branch
          %580 = sbr.rel (%p578) target = $region44
        $region43: #{sentimental_classifier_forward.1} parent=11 // pred_region
          _
        $region44: #{sentimental_classifier_forward.1} parent=11 // pred_fallthru
          _
        // Predicated region
        $region45: #{sentimental_classifier_forward.1} parent=11 // pred_check
          %p581 = pneg %p274
        $region46: #{sentimental_classifier_forward.1} parent=11 // pred_check_branch
          %583 = sbr.rel (%p581) target = $region48
        $region47: #{sentimental_classifier_forward.1} parent=11 // pred_region
          _
        $region48: #{sentimental_classifier_forward.1} parent=11 // pred_fallthru
          _
        // Predicated region
        $region49: #{sentimental_classifier_forward.1} parent=11 // pred_check
          %p584 = pneg %p295
        $region50: #{sentimental_classifier_forward.1} parent=11 // pred_check_branch
          %586 = sbr.rel (%p584) target = $region52
        $region51: #{sentimental_classifier_forward.1} parent=11 // pred_region
          _
        $region52: #{sentimental_classifier_forward.1} parent=11 // pred_fallthru
          _
        // Predicated region
        $region53: #{sentimental_classifier_forward.1} parent=11 // pred_check
          %p587 = pneg %p316
        $region54: #{sentimental_classifier_forward.1} parent=11 // pred_check_branch
          %589 = sbr.rel (%p587) target = $region56
        $region55: #{sentimental_classifier_forward.1} parent=11 // pred_region
          _
        $region56: #{sentimental_classifier_forward.1} parent=11 // pred_fallthru
          _
        // Predicated region
        $region57: #{sentimental_classifier_forward.1} parent=11 // pred_check
          %p590 = pneg %p337
        $region58: #{sentimental_classifier_forward.1} parent=11 // pred_check_branch
          %592 = sbr.rel (%p590) target = $region60
        $region59: #{sentimental_classifier_forward.1} parent=11 // pred_region
          _
        $region60: #{sentimental_classifier_forward.1} parent=11 // pred_fallthru
          _
        // Predicated region
        $region61: #{sentimental_classifier_forward.1} parent=11 // pred_check
          %p593 = pneg %p358
        $region62: #{sentimental_classifier_forward.1} parent=11 // pred_check_branch
          %595 = sbr.rel (%p593) target = $region64
        $region63: #{sentimental_classifier_forward.1} parent=11 // pred_region
          %597 = vsyncadd [#allocation6], 0
          %s598 = sshll.u32 %s14, 4
          %s599 = int_to_ptr.hbm [resolvable:$true] %s598
          %s600 = sshll.u32 [#allocation5], 4
          %s601 = int_to_ptr.vmem [resolvable:$true] %s600
          %606 = dma.hbm_to_vmem [thread:$0]  %s599, 2048, %s601, [#allocation6], 64, 64, 4
        $region64: #{sentimental_classifier_forward.1} parent=11 // pred_fallthru
          _
        // Predicated region
        $region65: #{sentimental_classifier_forward.1} parent=11 // pred_check
          %p607 = pneg %p379
        $region66: #{sentimental_classifier_forward.1} parent=11 // pred_check_branch
          %609 = sbr.rel (%p607) target = $region68
        $region67: #{sentimental_classifier_forward.1} parent=11 // pred_region
          _
        $region68: #{sentimental_classifier_forward.1} parent=11 // pred_fallthru
          _
        // Predicated region
        $region69: #{sentimental_classifier_forward.1} parent=11 // pred_check
          %p610 = pneg %p400
        $region70: #{sentimental_classifier_forward.1} parent=11 // pred_check_branch
          %612 = sbr.rel (%p610) target = $region72
        $region71: #{sentimental_classifier_forward.1} parent=11 // pred_region
          _
        $region72: #{sentimental_classifier_forward.1} parent=11 // pred_fallthru
          _
        // Predicated region
        $region73: #{sentimental_classifier_forward.1} parent=11 // pred_check
          %p613 = pneg %p421
        $region74: #{sentimental_classifier_forward.1} parent=11 // pred_check_branch
          %615 = sbr.rel (%p613) target = $region76
        $region75: #{sentimental_classifier_forward.1} parent=11 // pred_region
          _
        $region76: #{sentimental_classifier_forward.1} parent=11 // pred_fallthru
          _
        // Predicated region
        $region77: #{sentimental_classifier_forward.1} parent=11 // pred_check
          %p616 = pneg %p442
        $region78: #{sentimental_classifier_forward.1} parent=11 // pred_check_branch
          %618 = sbr.rel (%p616) target = $region80
        $region79: #{sentimental_classifier_forward.1} parent=11 // pred_region
          _
        $region80: #{sentimental_classifier_forward.1} parent=11 // pred_fallthru
          _
        // Predicated region
        $region81: #{sentimental_classifier_forward.1} parent=11 // pred_check
          %p619 = pneg %p463
        $region82: #{sentimental_classifier_forward.1} parent=11 // pred_check_branch
          %621 = sbr.rel (%p619) target = $region84
        $region83: #{sentimental_classifier_forward.1} parent=11 // pred_region
          _
        $region84: #{sentimental_classifier_forward.1} parent=11 // pred_fallthru
          _
        // Predicated region
        $region85: #{sentimental_classifier_forward.1} parent=11 // pred_check
          %p622 = pneg %p484
        $region86: #{sentimental_classifier_forward.1} parent=11 // pred_check_branch
          %624 = sbr.rel (%p622) target = $region88
        $region87: #{sentimental_classifier_forward.1} parent=11 // pred_region
          _
        $region88: #{sentimental_classifier_forward.1} parent=11 // pred_fallthru
          _
        // Predicated region
        $region89: #{sentimental_classifier_forward.1} parent=11 // pred_check
          %p625 = pneg %p505
        $region90: #{sentimental_classifier_forward.1} parent=11 // pred_check_branch
          %627 = sbr.rel (%p625) target = $region92
        $region91: #{sentimental_classifier_forward.1} parent=11 // pred_region
          _
        $region92: #{sentimental_classifier_forward.1} parent=11 // pred_fallthru
          _
      $region12: #{sentimental_classifier_forward.1} parent=5 // pred_fallthru
        _
      %p628 = scmp.lt.s32.totalorder %s33, 2
      // Predicated region
      $region93: #{sentimental_classifier_forward.1} parent=5 // pred_check
        %p629 = pneg %p628
      $region94: #{sentimental_classifier_forward.1} parent=5 // pred_check_branch
        %631 = sbr.rel (%p629) target = $region96
      $region95: #{sentimental_classifier_forward.1} parent=5 // pred_region
        // Predicated region
        $region97: #{sentimental_classifier_forward.1} parent=95 // pred_check
          %p632 = pneg %p53
        $region98: #{sentimental_classifier_forward.1} parent=95 // pred_check_branch
          %634 = sbr.rel (%p632) target = $region100
        $region99: #{sentimental_classifier_forward.1} parent=95 // pred_region
          %p635 = scmp.lt.s32.totalorder %s33, 1
          %s636 = scalar_select %p635, %s33, 1
          %s637 = smul.addr %s636, 8
          %s638 = scalar_lea.vmem %s0, %s637
        $region100: #{sentimental_classifier_forward.1} parent=95 // pred_fallthru
          _
        // Predicated region
        $region101: #{sentimental_classifier_forward.1} parent=95 // pred_check
          %p639 = pneg %p79
        $region102: #{sentimental_classifier_forward.1} parent=95 // pred_check_branch
          %641 = sbr.rel (%p639) target = $region104
        $region103: #{sentimental_classifier_forward.1} parent=95 // pred_region
          %p642 = scmp.lt.s32.totalorder %s33, 1
          %s643 = scalar_select %p642, %s33, 1
          %s644 = scalar_lea.vmem %s1, %s643
        $region104: #{sentimental_classifier_forward.1} parent=95 // pred_fallthru
          _
      $region96: #{sentimental_classifier_forward.1} parent=5 // pred_fallthru
        _
      %p645 = scmp.le.s32.totalorder 1, %s33
      %p646 = scmp.lt.s32.totalorder %s33, 3
      %p647 = pnand %p645, %p646
      %p648 = pneg %p647
      // Predicated region
      $region105: #{sentimental_classifier_forward.1} parent=5 // pred_check
        _
      $region106: #{sentimental_classifier_forward.1} parent=5 // pred_check_branch
        %650 = sbr.rel (%p647) target = $region108
      $region107: #{sentimental_classifier_forward.1} parent=5 // pred_region
        %s651 = ssub.s32 %s33, 1
        // Predicated region
        $region109: #{sentimental_classifier_forward.1} parent=107 // pred_check
          %p652 = pneg %p190
        $region110: #{sentimental_classifier_forward.1} parent=107 // pred_check_branch
          %654 = sbr.rel (%p652) target = $region112
        $region111: #{sentimental_classifier_forward.1} parent=107 // pred_region
          %656 = dma.done [#allocation3], 6144
        $region112: #{sentimental_classifier_forward.1} parent=107 // pred_fallthru
          _
        // Predicated region
        $region113: #{sentimental_classifier_forward.1} parent=107 // pred_check
          %p657 = pneg %p358
        $region114: #{sentimental_classifier_forward.1} parent=107 // pred_check_branch
          %659 = sbr.rel (%p657) target = $region116
        $region115: #{sentimental_classifier_forward.1} parent=107 // pred_region
          %661 = dma.done [#allocation6], 2048
        $region116: #{sentimental_classifier_forward.1} parent=107 // pred_fallthru
          _
        %p662 = scmp.lt.s32.totalorder %s38, 1
        %s663 = scalar_select %p662, %s38, 1
        %s664 = smul.addr %s663, 8
        %s665 = scalar_lea.vmem %s0, %s664
        %p666 = pneg %p59
        %p667 = pneg %p56
        %p668 = scmp.lt.s32.totalorder %s38, 1
        %s669 = scalar_select %p668, %s38, 1
        %s670 = scalar_lea.vmem %s1, %s669
        %p671 = pneg %p85
        %p672 = pneg %p82
        %p673 = pneg %p106
        %p674 = pneg %p103
        %p675 = pneg %p127
        %p676 = pneg %p124
        %p677 = pneg %p148
        %p678 = pneg %p145
        %p679 = pneg %p169
        %p680 = pneg %p166
        %p681 = pneg %p190
        %p682 = pneg %p187
        %p683 = pneg %p211
        %p684 = pneg %p208
        %p685 = pneg %p232
        %p686 = pneg %p229
        %p687 = pneg %p253
        %p688 = pneg %p250
        %p689 = pneg %p274
        %p690 = pneg %p271
        %p691 = pneg %p295
        %p692 = pneg %p292
        %p693 = pneg %p316
        %p694 = pneg %p313
        %p695 = pneg %p337
        %p696 = pneg %p334
        %p697 = pneg %p358
        %p698 = pneg %p355
        %p699 = pneg %p379
        %p700 = pneg %p376
        %p701 = pneg %p400
        %p702 = pneg %p397
        %p703 = pneg %p421
        %p704 = pneg %p418
        %p705 = pneg %p442
        %p706 = pneg %p439
        %p707 = pneg %p463
        %p708 = pneg %p460
        %p709 = pneg %p484
        %p710 = pneg %p481
        %p711 = pneg %p505
        %p712 = pneg %p502
        %p713 = pneg %p531
        %p714 = pneg %p528
        %s715 = sand.u32 %s518, 1
        %s716 = scalar_lea.sflag [#allocation4], %s715
        %s717 = sand.u32 %s518, 1
        %s718 = scalar_lea.vmem [#allocation7], %s717
        %p719 = scmp.lt.s32.totalorder %s38, 1
        %s720 = scalar_select %p719, %s38, 1
        %s721 = smul.addr %s720, 8
        %s722 = scalar_lea.vmem %s0, %s721
        %p723 = scmp.lt.s32.totalorder %s38, 1
        %s724 = scalar_select %p723, %s38, 1
        %s725 = scalar_lea.vmem %s1, %s724
        %v727 = vld [vmem:[%s2] sm:$0x1]
        %v728 = vld [vmem:[%s2 + $0x1] sm:$0x1]
        %v729 = vld [vmem:[%s2 + $0x2] sm:$0x1]
        %v730 = vld [vmem:[%s2 + $0x3] sm:$0x1]
        %vm731 = vcmask 1040384
        %v732 = vsel %vm731, %v727, 0.0
        %v733 = vsel %vm731, %v728, 0.0
        %v734 = vadd.f32 %v732, %v733
        %v735 = vsel %vm731, %v729, 0.0
        %v736 = vadd.f32 %v734, %v735
        %v737 = vsel %vm731, %v730, 0.0
        %v738 = vadd.f32 %v736, %v737
        %v739 = vld [vmem:[%s3] sm:$0xf]
        %v740 = vld [vmem:[%s3 + $0x4] sm:$0xf]
        %v741 = vld [vmem:[%s3 + $0x8] sm:$0xf]
        %v742 = vld [vmem:[%s3 + $0xc] sm:$0xf]
        %v743 = vld [vmem:[%s722] sm:$0xff]
        %v744 = vld [vmem:[%s725] sm:$0x1]
        %v745 = vld [vmem:[%s4] sm:$0x1]
        %v746 = vld [vmem:[%s5] sm:$0x1]
        %747 = vadd.xlane.f32.xlu0 %v743
        %v748 = vpop.xlane.xlu0 %747
        %v749 = vmul.f32 %v748, 0.03125
        %v750 = vsub.f32 %v743, %v749
        %v751 = vperm.slane %v738, 0
        %v752 = vmul.f32 %v750, %v751
        %v753 = vmul.f32 %v752, %v752
        %754 = vadd.xlane.f32.xlu0 %v753
        %v755 = vpop.xlane.xlu0 %754
        %v756 = vmul.f32 %v755, 0.03125
        %v757 = vadd.f32 %v756, 1e-12
        %v758 = vrsqrt.pop %v757
        %v759 = vmul.f32 %v758, %v757
        %v760 = vmul.f32 %v759, %v758
        %v761 = vmul.f32 0.5, %v760
        %v762 = vsub.f32 1.5, %v761
        %v763 = vmul.f32 %v758, %v762
        %vm764 = vweird.f32 %v757
        %vm765 = vweird.f32 %v758
        %vm766 = vmor %vm764, %vm765
        %v767 = vsel %vm766, %v758, %v763
        %v768 = vmul.f32 %v752, %v767
        %v770 = vperm.slane %v745, 0
        %v772 = vmul.f32 %v768, %v770
        %v774 = vperm.slane %v746, 0
        %v776 = vadd.f32 %v772, %v774
        %v777 = vpack.c.bf16 %v776, %v776
        %v778 = vld [vmem:[#allocation2] sm:$0xff]
        %v779 = vld [vmem:[#allocation2 + $0x8] sm:$0xf]
        %v780 = vld [vmem:[#allocation2 + $0xc] sm:$0xff]
        %v781 = vld [vmem:[#allocation2 + $0x14] sm:$0xf]
        %v782 = vld [vmem:[#allocation2 + $0x18] sm:$0xff]
        %v783 = vld [vmem:[#allocation2 + $0x20] sm:$0xf]
        %v784 = vld [vmem:[#allocation2 + $0x24] sm:$0xff]
        %v785 = vld [vmem:[#allocation2 + $0x2c] sm:$0xf]
        %v786 = vld [vmem:[#allocation2 + $0x30] sm:$0xff]
        %v787 = vld [vmem:[#allocation2 + $0x38] sm:$0xf]
        %v788 = vld [vmem:[#allocation2 + $0x3c] sm:$0xff]
        %v789 = vld [vmem:[#allocation2 + $0x44] sm:$0xf]
        %v790 = vld [vmem:[#allocation2 + $0x48] sm:$0xff]
        %v791 = vld [vmem:[#allocation2 + $0x50] sm:$0xf]
        %v792 = vld [vmem:[#allocation2 + $0x54] sm:$0xff]
        %v793 = vld [vmem:[#allocation2 + $0x5c] sm:$0xf]
        %v794 = vld [vmem:[#allocation2 + $0x60] sm:$0xff]
        %v795 = vld [vmem:[#allocation2 + $0x68] sm:$0xf]
        %v796 = vld [vmem:[#allocation2 + $0x6c] sm:$0xff]
        %v797 = vld [vmem:[#allocation2 + $0x74] sm:$0xf]
        %v798 = vld [vmem:[#allocation2 + $0x78] sm:$0xff]
        %v799 = vld [vmem:[#allocation2 + $0x80] sm:$0xf]
        %v800 = vld [vmem:[#allocation2 + $0x84] sm:$0xff]
        %v801 = vld [vmem:[#allocation2 + $0x8c] sm:$0xf]
        %v802 = vld [vmem:[#allocation2 + $0x90] sm:$0xff]
        %v803 = vld [vmem:[#allocation2 + $0x98] sm:$0xf]
        %v804 = vld [vmem:[#allocation2 + $0x9c] sm:$0xff]
        %v805 = vld [vmem:[#allocation2 + $0xa4] sm:$0xf]
        %v806 = vld [vmem:[#allocation2 + $0xa8] sm:$0xff]
        %v807 = vld [vmem:[#allocation2 + $0xb0] sm:$0xf]
        %v808 = vld [vmem:[#allocation2 + $0xb4] sm:$0xff]
        %v809 = vld [vmem:[#allocation2 + $0xbc] sm:$0xf]
        %v810 = vld [vmem:[%s7] sm:$0x7]
        %v812 = vperm.slane %v810, 0
        %v813 = vperm.slane %v810, 1
        %v814 = vperm.slane %v810, 2
        %v850 = vunpack.c.l.b16 %v778
        %v851 = vunpack.c.h.b16 %v778
        %v852 = vunpack.c.l.b16 %v779
        %v853 = vunpack.c.l.b16 %v780
        %v854 = vunpack.c.h.b16 %v780
        %v855 = vunpack.c.l.b16 %v781
        %v856 = vunpack.c.l.b16 %v782
        %v857 = vunpack.c.h.b16 %v782
        %v858 = vunpack.c.l.b16 %v783
        %v859 = vunpack.c.l.b16 %v784
        %v860 = vunpack.c.h.b16 %v784
        %v861 = vunpack.c.l.b16 %v785
        %v862 = vunpack.c.l.b16 %v786
        %v863 = vunpack.c.h.b16 %v786
        %v864 = vunpack.c.l.b16 %v787
        %v865 = vunpack.c.l.b16 %v788
        %v866 = vunpack.c.h.b16 %v788
        %v867 = vunpack.c.l.b16 %v789
        %v868 = vunpack.c.l.b16 %v790
        %v869 = vunpack.c.h.b16 %v790
        %v870 = vunpack.c.l.b16 %v791
        %v871 = vunpack.c.l.b16 %v792
        %v872 = vunpack.c.h.b16 %v792
        %v873 = vunpack.c.l.b16 %v793
        %v874 = vunpack.c.l.b16 %v794
        %v875 = vunpack.c.h.b16 %v794
        %v876 = vunpack.c.l.b16 %v795
        %v877 = vunpack.c.l.b16 %v796
        %v878 = vunpack.c.h.b16 %v796
        %v879 = vunpack.c.l.b16 %v797
        %v880 = vunpack.c.l.b16 %v798
        %v881 = vunpack.c.h.b16 %v798
        %v882 = vunpack.c.l.b16 %v799
        %v883 = vunpack.c.l.b16 %v800
        %v884 = vunpack.c.h.b16 %v800
        %v885 = vunpack.c.l.b16 %v801
        %v886 = vunpack.c.l.b16 %v802
        %v887 = vunpack.c.h.b16 %v802
        %v888 = vunpack.c.l.b16 %v803
        %v889 = vunpack.c.l.b16 %v804
        %v890 = vunpack.c.h.b16 %v804
        %v891 = vunpack.c.l.b16 %v805
        %v892 = vunpack.c.l.b16 %v806
        %v893 = vunpack.c.h.b16 %v806
        %v894 = vunpack.c.l.b16 %v807
        %v895 = vunpack.c.l.b16 %v808
        %v896 = vunpack.c.h.b16 %v808
        %v897 = vunpack.c.l.b16 %v809
        %v898 = vpack.c.b16 %v853, %v850
        %v899 = vpack.c.b16 %v854, %v851
        %v900 = vpack.c.b16 %v855, %v852
        %v901 = vpack.c.b16 %v859, %v856
        %v902 = vpack.c.b16 %v860, %v857
        %v903 = vpack.c.b16 %v861, %v858
        %v904 = vpack.c.b16 %v865, %v862
        %v905 = vpack.c.b16 %v866, %v863
        %v906 = vpack.c.b16 %v867, %v864
        %v907 = vpack.c.b16 %v871, %v868
        %v908 = vpack.c.b16 %v872, %v869
        %v909 = vpack.c.b16 %v873, %v870
        %v910 = vpack.c.b16 %v877, %v874
        %v911 = vpack.c.b16 %v878, %v875
        %v912 = vpack.c.b16 %v879, %v876
        %v913 = vpack.c.b16 %v883, %v880
        %v914 = vpack.c.b16 %v884, %v881
        %v915 = vpack.c.b16 %v885, %v882
        %v916 = vpack.c.b16 %v889, %v886
        %v917 = vpack.c.b16 %v890, %v887
        %v918 = vpack.c.b16 %v891, %v888
        %v919 = vpack.c.b16 %v895, %v892
        %v920 = vpack.c.b16 %v896, %v893
        %v921 = vpack.c.b16 %v897, %v894
        %946 = vmatpush.bf16.msra.mxu0 %v919
        %947 = vmatpush.bf16.msra.mxu0 %v916
        %948 = vmatpush.bf16.msra.mxu0 %v913
        %949 = vmatpush.bf16.msra.mxu0 %v910
        %950 = vmatpush.bf16.msra.mxu0 %v907
        %951 = vmatpush.bf16.msra.mxu0 %v904
        %952 = vmatpush.bf16.msra.mxu0 %v901
        %953 = vmatpush.bf16.msra.mxu0 %v898
        %954 = vmatmul.bf16.gmra.mxu0 %v777
        %v955 = vpop.f32.mrf.mxu0
        %v956 = vadd.f32 %v812, %v955
        %v957 = vpop.f32.mrf.mxu0
        %958 = vdwg.mxu0
        %959 = vmatpush.bf16.msra.mxu0 %v920
        %960 = vmatpush.bf16.msra.mxu0 %v917
        %961 = vmatpush.bf16.msra.mxu0 %v914
        %962 = vmatpush.bf16.msra.mxu0 %v911
        %963 = vmatpush.bf16.msra.mxu0 %v908
        %964 = vmatpush.bf16.msra.mxu0 %v905
        %965 = vmatpush.bf16.msra.mxu0 %v902
        %966 = vmatpush.bf16.msra.mxu0 %v899
        %967 = vmatmul.bf16.gmra.mxu0 %v777
        %v968 = vpop.f32.mrf.mxu0
        %v969 = vadd.f32 %v813, %v968
        %v970 = vpop.f32.mrf.mxu0
        %971 = vdwg.mxu0
        %972 = vmatpush.bf16.msra.mxu0 %v921
        %973 = vmatpush.bf16.msra.mxu0 %v918
        %974 = vmatpush.bf16.msra.mxu0 %v915
        %975 = vmatpush.bf16.msra.mxu0 %v912
        %976 = vmatpush.bf16.msra.mxu0 %v909
        %977 = vmatpush.bf16.msra.mxu0 %v906
        %978 = vmatpush.bf16.msra.mxu0 %v903
        %979 = vmatpush.bf16.msra.mxu0 %v900
        %980 = vmatmul.bf16.gmra.mxu0 %v777
        %v981 = vpop.f32.mrf.mxu0
        %v982 = vadd.f32 %v814, %v981
        %v983 = vpop.f32.mrf.mxu0
        %984 = vdwg.mxu0
        %v986 = vperm.slane %v727, 0
        %v988 = vmul.f32 %v969, %v986
        %v990 = vperm.slane %v728, 0
        %v992 = vmul.f32 %v969, %v990
        %v994 = vperm.slane %v729, 0
        %v996 = vmul.f32 %v969, %v994
        %v998 = vperm.slane %v730, 0
        %v1000 = vmul.f32 %v969, %v998
        %v1001 = vmul.f32 %v982, %v986
        %v1002 = vmul.f32 %v982, %v990
        %v1003 = vmul.f32 %v982, %v994
        %v1004 = vmul.f32 %v982, %v998
        %v1005 = vpack.c.bf16 %v956, %v956
        %v1006 = vpack.c.bf16 %v992, %v988
        %v1007 = vpack.c.bf16 %v1000, %v996
        %1008 = vmatpush.bf16.xpose.msra.mxu0 0
        %1009 = vmatpush.bf16.xpose.msra.mxu0 0
        %1010 = vmatpush.bf16.xpose.msra.mxu0 0
        %1011 = vmatpush.bf16.xpose.msra.mxu0 0
        %1012 = vmatpush.bf16.xpose.msra.mxu0 0
        %1013 = vmatpush.bf16.xpose.msra.mxu0 0
        %1014 = vmatpush.bf16.xpose.msra.mxu0 %v1007
        %1015 = vmatpush.bf16.xpose.msra.mxu0 %v1006
        %1016 = vmatmul.bf16.gmra.mxu0 %v1005
        %v1017 = vpop.f32.mrf.mxu0
        %v1018 = vadd.f32 0.0, %v1017
        %v1019 = vpop.f32.mrf.mxu0
        %1020 = vdwg.mxu0
        %v1021 = vmul.f32 %v1018, 0.35355338
        %v1023 = vperm.slane %v744, 0
        %v1025 = vadd.f32 %v1021, %v1023
        %vm1026 = vcmask 261120
        %v1027 = vsel %vm1026, %v1025, -inf
        %1028 = vmax.xlane.f32.xlu0 %v1027
        %v1029 = vpop.xlane.xlu0 %1028
        %v1030 = vsub.f32 %v1025, %v1029
        %v1031 = vmul.f32 %v1030, 1.442695
        %v1032 = vpow.pop %v1031
        %v1033 = vpack.c.bf16 %v1032, %v1032
        %v1038 = vunpack.c.l.b16 %v739
        %v1039 = vunpack.c.l.b16 %v740
        %v1040 = vunpack.c.l.b16 %v741
        %v1041 = vunpack.c.l.b16 %v742
        %v1042 = vpack.c.b16 %v1039, %v1038
        %v1043 = vpack.c.b16 %v1041, %v1040
        %v1047 = vsel %vm1026, %v1033, 0
        %1049 = vmatpush.bf16.msra.mxu0 0
        %1050 = vmatpush.bf16.msra.mxu0 0
        %1051 = vmatpush.bf16.msra.mxu0 0
        %1052 = vmatpush.bf16.msra.mxu0 0
        %1053 = vmatpush.bf16.msra.mxu0 0
        %1054 = vmatpush.bf16.msra.mxu0 0
        %1055 = vmatpush.bf16.msra.mxu0 %v1043
        %1056 = vmatpush.bf16.msra.mxu0 %v1042
        %1057 = vmatmul.bf16.gmra.mxu0 %v1047
        %v1058 = vpop.f32.mrf.mxu0
        %v1059 = vadd.f32 0.0, %v1058
        %v1060 = vpop.f32.mrf.mxu0
        %1061 = vdwg.mxu0
        %v1062 = vrcp.pop %v1059
        %v1063 = vmul.f32 %v1032, %v1062
        %v1064 = vpack.c.bf16 %v1063, %v1063
        %v1065 = vpack.c.bf16 %v1002, %v1001
        %v1066 = vpack.c.bf16 %v1004, %v1003
        %v1068 = vsel %vm1026, %v1064, 0
        %1070 = vmatpush.bf16.msra.mxu0 0
        %1071 = vmatpush.bf16.msra.mxu0 0
        %1072 = vmatpush.bf16.msra.mxu0 0
        %1073 = vmatpush.bf16.msra.mxu0 0
        %1074 = vmatpush.bf16.msra.mxu0 0
        %1075 = vmatpush.bf16.msra.mxu0 0
        %1076 = vmatpush.bf16.msra.mxu0 %v1066
        %1077 = vmatpush.bf16.msra.mxu0 %v1065
        %1078 = vmatmul.bf16.gmra.mxu0 %v1068
        %v1079 = vpop.f32.mrf.mxu0
        %v1080 = vadd.f32 0.0, %v1079
        %v1081 = vpop.f32.mrf.mxu0
        %1082 = vdwg.mxu0
        %v1083 = vpack.c.bf16 %v1080, %v1080
        %v1084 = vld [vmem:[%s8] sm:$0xf]
        %v1085 = vld [vmem:[%s8 + $0x4] sm:$0xf]
        %v1086 = vld [vmem:[%s8 + $0x8] sm:$0xf]
        %v1087 = vld [vmem:[%s8 + $0xc] sm:$0xf]
        %v1088 = vld [vmem:[%s8 + $0x10] sm:$0xf]
        %v1089 = vld [vmem:[%s8 + $0x14] sm:$0xf]
        %v1090 = vld [vmem:[%s8 + $0x18] sm:$0xf]
        %v1091 = vld [vmem:[%s8 + $0x1c] sm:$0xf]
        %v1092 = vld [vmem:[%s8 + $0x20] sm:$0xf]
        %v1093 = vld [vmem:[%s8 + $0x24] sm:$0xf]
        %v1094 = vld [vmem:[%s8 + $0x28] sm:$0xf]
        %v1095 = vld [vmem:[%s8 + $0x2c] sm:$0xf]
        %v1096 = vld [vmem:[%s8 + $0x30] sm:$0xf]
        %v1097 = vld [vmem:[%s8 + $0x34] sm:$0xf]
        %v1098 = vld [vmem:[%s8 + $0x38] sm:$0xf]
        %v1099 = vld [vmem:[%s8 + $0x3c] sm:$0xf]
        %v1100 = vld [vmem:[%s9] sm:$0x1]
        %v1102 = vperm.slane %v1100, 0
        %v1120 = vunpack.c.l.b16 %v1084
        %v1121 = vunpack.c.l.b16 %v1085
        %v1122 = vunpack.c.l.b16 %v1086
        %v1123 = vunpack.c.l.b16 %v1087
        %v1124 = vunpack.c.l.b16 %v1088
        %v1125 = vunpack.c.l.b16 %v1089
        %v1126 = vunpack.c.l.b16 %v1090
        %v1127 = vunpack.c.l.b16 %v1091
        %v1128 = vunpack.c.l.b16 %v1092
        %v1129 = vunpack.c.l.b16 %v1093
        %v1130 = vunpack.c.l.b16 %v1094
        %v1131 = vunpack.c.l.b16 %v1095
        %v1132 = vunpack.c.l.b16 %v1096
        %v1133 = vunpack.c.l.b16 %v1097
        %v1134 = vunpack.c.l.b16 %v1098
        %v1135 = vunpack.c.l.b16 %v1099
        %v1136 = vpack.c.b16 %v1121, %v1120
        %v1137 = vpack.c.b16 %v1123, %v1122
        %v1138 = vpack.c.b16 %v1125, %v1124
        %v1139 = vpack.c.b16 %v1127, %v1126
        %v1140 = vpack.c.b16 %v1129, %v1128
        %v1141 = vpack.c.b16 %v1131, %v1130
        %v1142 = vpack.c.b16 %v1133, %v1132
        %v1143 = vpack.c.b16 %v1135, %v1134
        %1152 = vmatpush.bf16.msra.mxu0 %v1143
        %1153 = vmatpush.bf16.msra.mxu0 %v1142
        %1154 = vmatpush.bf16.msra.mxu0 %v1141
        %1155 = vmatpush.bf16.msra.mxu0 %v1140
        %1156 = vmatpush.bf16.msra.mxu0 %v1139
        %1157 = vmatpush.bf16.msra.mxu0 %v1138
        %1158 = vmatpush.bf16.msra.mxu0 %v1137
        %1159 = vmatpush.bf16.msra.mxu0 %v1136
        %1160 = vmatmul.bf16.gmra.mxu0 %v1083
        %v1161 = vpop.f32.mrf.mxu0
        %v1162 = vadd.f32 %v1102, %v1161
        %v1163 = vpop.f32.mrf.mxu0
        %1164 = vdwg.mxu0
        %v1165 = vadd.f32 %v1162, %v776
        %v1166 = vld [vmem:[%s10] sm:$0x1]
        %v1167 = vld [vmem:[%s11] sm:$0x1]
        %1168 = vadd.xlane.f32.xlu0 %v1165
        %v1169 = vpop.xlane.xlu0 %1168
        %v1170 = vmul.f32 %v1169, 0.03125
        %v1171 = vsub.f32 %v1165, %v1170
        %v1172 = vmul.f32 %v1171, %v751
        %v1173 = vmul.f32 %v1172, %v1172
        %1174 = vadd.xlane.f32.xlu0 %v1173
        %v1175 = vpop.xlane.xlu0 %1174
        %v1176 = vmul.f32 %v1175, 0.03125
        %v1177 = vadd.f32 %v1176, 1e-12
        %v1178 = vrsqrt.pop %v1177
        %v1179 = vmul.f32 %v1178, %v1177
        %v1180 = vmul.f32 %v1179, %v1178
        %v1181 = vmul.f32 0.5, %v1180
        %v1182 = vsub.f32 1.5, %v1181
        %v1183 = vmul.f32 %v1178, %v1182
        %vm1184 = vweird.f32 %v1177
        %vm1185 = vweird.f32 %v1178
        %vm1186 = vmor %vm1184, %vm1185
        %v1187 = vsel %vm1186, %v1178, %v1183
        %v1188 = vmul.f32 %v1172, %v1187
        %v1190 = vperm.slane %v1166, 0
        %v1192 = vmul.f32 %v1188, %v1190
        %v1194 = vperm.slane %v1167, 0
        %v1196 = vadd.f32 %v1192, %v1194
        %v1197 = vpack.c.bf16 %v1196, %v1196
        %v1198 = vld [vmem:[%s12] sm:$0xf]
        %v1199 = vld [vmem:[%s12 + $0x4] sm:$0xf]
        %v1200 = vld [vmem:[%s12 + $0x8] sm:$0xf]
        %v1201 = vld [vmem:[%s12 + $0xc] sm:$0xf]
        %v1202 = vld [vmem:[%s12 + $0x10] sm:$0xf]
        %v1203 = vld [vmem:[%s12 + $0x14] sm:$0xf]
        %v1204 = vld [vmem:[%s12 + $0x18] sm:$0xf]
        %v1205 = vld [vmem:[%s12 + $0x1c] sm:$0xf]
        %v1206 = vld [vmem:[%s12 + $0x20] sm:$0xf]
        %v1207 = vld [vmem:[%s12 + $0x24] sm:$0xf]
        %v1208 = vld [vmem:[%s12 + $0x28] sm:$0xf]
        %v1209 = vld [vmem:[%s12 + $0x2c] sm:$0xf]
        %v1210 = vld [vmem:[%s12 + $0x30] sm:$0xf]
        %v1211 = vld [vmem:[%s12 + $0x34] sm:$0xf]
        %v1212 = vld [vmem:[%s12 + $0x38] sm:$0xf]
        %v1213 = vld [vmem:[%s12 + $0x3c] sm:$0xf]
        %v1214 = vld [vmem:[%s13] sm:$0x1]
        %v1216 = vperm.slane %v1214, 0
        %v1234 = vunpack.c.l.b16 %v1198
        %v1235 = vunpack.c.l.b16 %v1199
        %v1236 = vunpack.c.l.b16 %v1200
        %v1237 = vunpack.c.l.b16 %v1201
        %v1238 = vunpack.c.l.b16 %v1202
        %v1239 = vunpack.c.l.b16 %v1203
        %v1240 = vunpack.c.l.b16 %v1204
        %v1241 = vunpack.c.l.b16 %v1205
        %v1242 = vunpack.c.l.b16 %v1206
        %v1243 = vunpack.c.l.b16 %v1207
        %v1244 = vunpack.c.l.b16 %v1208
        %v1245 = vunpack.c.l.b16 %v1209
        %v1246 = vunpack.c.l.b16 %v1210
        %v1247 = vunpack.c.l.b16 %v1211
        %v1248 = vunpack.c.l.b16 %v1212
        %v1249 = vunpack.c.l.b16 %v1213
        %v1250 = vpack.c.b16 %v1235, %v1234
        %v1251 = vpack.c.b16 %v1237, %v1236
        %v1252 = vpack.c.b16 %v1239, %v1238
        %v1253 = vpack.c.b16 %v1241, %v1240
        %v1254 = vpack.c.b16 %v1243, %v1242
        %v1255 = vpack.c.b16 %v1245, %v1244
        %v1256 = vpack.c.b16 %v1247, %v1246
        %v1257 = vpack.c.b16 %v1249, %v1248
        %1266 = vmatpush.bf16.msra.mxu0 %v1257
        %1267 = vmatpush.bf16.msra.mxu0 %v1256
        %1268 = vmatpush.bf16.msra.mxu0 %v1255
        %1269 = vmatpush.bf16.msra.mxu0 %v1254
        %1270 = vmatpush.bf16.msra.mxu0 %v1253
        %1271 = vmatpush.bf16.msra.mxu0 %v1252
        %1272 = vmatpush.bf16.msra.mxu0 %v1251
        %1273 = vmatpush.bf16.msra.mxu0 %v1250
        %1274 = vmatmul.bf16.gmra.mxu0 %v1197
        %v1275 = vpop.f32.mrf.mxu0
        %v1276 = vadd.f32 %v1216, %v1275
        %v1277 = vpop.f32.mrf.mxu0
        %1278 = vdwg.mxu0
        %v1279 = vmul.f32 %v1276, %v1276
        %v1280 = vmul.f32 %v1276, %v1279
        %v1281 = vmul.f32 %v1280, 0.044715
        %v1282 = vadd.f32 %v1276, %v1281
        %v1283 = vmul.f32 %v1282, 0.7978846
        %v1284 = vtanh.pop %v1283
        %v1285 = vadd.f32 %v1284, 1.0
        %v1286 = vmul.f32 %v1285, 0.5
        %v1287 = vmul.f32 %v1276, %v1286
        %v1288 = vpack.c.bf16 %v1287, %v1287
        %v1289 = vld [vmem:[#allocation5] sm:$0xf]
        %v1290 = vld [vmem:[#allocation5 + $0x4] sm:$0xf]
        %v1291 = vld [vmem:[#allocation5 + $0x8] sm:$0xf]
        %v1292 = vld [vmem:[#allocation5 + $0xc] sm:$0xf]
        %v1293 = vld [vmem:[#allocation5 + $0x10] sm:$0xf]
        %v1294 = vld [vmem:[#allocation5 + $0x14] sm:$0xf]
        %v1295 = vld [vmem:[#allocation5 + $0x18] sm:$0xf]
        %v1296 = vld [vmem:[#allocation5 + $0x1c] sm:$0xf]
        %v1297 = vld [vmem:[#allocation5 + $0x20] sm:$0xf]
        %v1298 = vld [vmem:[#allocation5 + $0x24] sm:$0xf]
        %v1299 = vld [vmem:[#allocation5 + $0x28] sm:$0xf]
        %v1300 = vld [vmem:[#allocation5 + $0x2c] sm:$0xf]
        %v1301 = vld [vmem:[#allocation5 + $0x30] sm:$0xf]
        %v1302 = vld [vmem:[#allocation5 + $0x34] sm:$0xf]
        %v1303 = vld [vmem:[#allocation5 + $0x38] sm:$0xf]
        %v1304 = vld [vmem:[#allocation5 + $0x3c] sm:$0xf]
        %v1305 = vld [vmem:[%s15] sm:$0x1]
        %v1307 = vperm.slane %v1305, 0
        %v1325 = vunpack.c.l.b16 %v1289
        %v1326 = vunpack.c.l.b16 %v1290
        %v1327 = vunpack.c.l.b16 %v1291
        %v1328 = vunpack.c.l.b16 %v1292
        %v1329 = vunpack.c.l.b16 %v1293
        %v1330 = vunpack.c.l.b16 %v1294
        %v1331 = vunpack.c.l.b16 %v1295
        %v1332 = vunpack.c.l.b16 %v1296
        %v1333 = vunpack.c.l.b16 %v1297
        %v1334 = vunpack.c.l.b16 %v1298
        %v1335 = vunpack.c.l.b16 %v1299
        %v1336 = vunpack.c.l.b16 %v1300
        %v1337 = vunpack.c.l.b16 %v1301
        %v1338 = vunpack.c.l.b16 %v1302
        %v1339 = vunpack.c.l.b16 %v1303
        %v1340 = vunpack.c.l.b16 %v1304
        %v1341 = vpack.c.b16 %v1326, %v1325
        %v1342 = vpack.c.b16 %v1328, %v1327
        %v1343 = vpack.c.b16 %v1330, %v1329
        %v1344 = vpack.c.b16 %v1332, %v1331
        %v1345 = vpack.c.b16 %v1334, %v1333
        %v1346 = vpack.c.b16 %v1336, %v1335
        %v1347 = vpack.c.b16 %v1338, %v1337
        %v1348 = vpack.c.b16 %v1340, %v1339
        %1357 = vmatpush.bf16.msra.mxu0 %v1348
        %1358 = vmatpush.bf16.msra.mxu0 %v1347
        %1359 = vmatpush.bf16.msra.mxu0 %v1346
        %1360 = vmatpush.bf16.msra.mxu0 %v1345
        %1361 = vmatpush.bf16.msra.mxu0 %v1344
        %1362 = vmatpush.bf16.msra.mxu0 %v1343
        %1363 = vmatpush.bf16.msra.mxu0 %v1342
        %1364 = vmatpush.bf16.msra.mxu0 %v1341
        %1365 = vmatmul.bf16.gmra.mxu0 %v1288
        %v1366 = vpop.f32.mrf.mxu0
        %v1367 = vadd.f32 %v1307, %v1366
        %v1368 = vpop.f32.mrf.mxu0
        %1369 = vdwg.mxu0
        %v1370 = vadd.f32 %v1367, %v1196
        %v1371 = vld [vmem:[%s16] sm:$0x1]
        %v1372 = vld [vmem:[%s17] sm:$0x1]
        %1373 = vadd.xlane.f32.xlu0 %v1370
        %v1374 = vpop.xlane.xlu0 %1373
        %v1375 = vmul.f32 %v1374, 0.03125
        %v1376 = vsub.f32 %v1370, %v1375
        %v1377 = vmul.f32 %v1376, %v751
        %v1378 = vmul.f32 %v1377, %v1377
        %1379 = vadd.xlane.f32.xlu0 %v1378
        %v1380 = vpop.xlane.xlu0 %1379
        %v1381 = vmul.f32 %v1380, 0.03125
        %v1382 = vadd.f32 %v1381, 1e-12
        %v1383 = vrsqrt.pop %v1382
        %v1384 = vmul.f32 %v1383, %v1382
        %v1385 = vmul.f32 %v1384, %v1383
        %v1386 = vmul.f32 0.5, %v1385
        %v1387 = vsub.f32 1.5, %v1386
        %v1388 = vmul.f32 %v1383, %v1387
        %vm1389 = vweird.f32 %v1382
        %vm1390 = vweird.f32 %v1383
        %vm1391 = vmor %vm1389, %vm1390
        %v1392 = vsel %vm1391, %v1383, %v1388
        %v1393 = vmul.f32 %v1377, %v1392
        %v1395 = vperm.slane %v1371, 0
        %v1397 = vmul.f32 %v1393, %v1395
        %v1399 = vperm.slane %v1372, 0
        %v1401 = vadd.f32 %v1397, %v1399
        %v1402 = vpack.c.bf16 %v1401, %v1401
        %s1403 = scalar_lea.vmem [#allocation2], 192
        %v1404 = vld [vmem:[%s1403] sm:$0xff]
        %v1405 = vld [vmem:[%s1403 + $0x8] sm:$0xf]
        %v1406 = vld [vmem:[%s1403 + $0xc] sm:$0xff]
        %v1407 = vld [vmem:[%s1403 + $0x14] sm:$0xf]
        %v1408 = vld [vmem:[%s1403 + $0x18] sm:$0xff]
        %v1409 = vld [vmem:[%s1403 + $0x20] sm:$0xf]
        %v1410 = vld [vmem:[%s1403 + $0x24] sm:$0xff]
        %v1411 = vld [vmem:[%s1403 + $0x2c] sm:$0xf]
        %v1412 = vld [vmem:[%s1403 + $0x30] sm:$0xff]
        %v1413 = vld [vmem:[%s1403 + $0x38] sm:$0xf]
        %v1414 = vld [vmem:[%s1403 + $0x3c] sm:$0xff]
        %v1415 = vld [vmem:[%s1403 + $0x44] sm:$0xf]
        %v1416 = vld [vmem:[%s1403 + $0x48] sm:$0xff]
        %v1417 = vld [vmem:[%s1403 + $0x50] sm:$0xf]
        %v1418 = vld [vmem:[%s1403 + $0x54] sm:$0xff]
        %v1419 = vld [vmem:[%s1403 + $0x5c] sm:$0xf]
        %v1420 = vld [vmem:[%s1403 + $0x60] sm:$0xff]
        %v1421 = vld [vmem:[%s1403 + $0x68] sm:$0xf]
        %v1422 = vld [vmem:[%s1403 + $0x6c] sm:$0xff]
        %v1423 = vld [vmem:[%s1403 + $0x74] sm:$0xf]
        %v1424 = vld [vmem:[%s1403 + $0x78] sm:$0xff]
        %v1425 = vld [vmem:[%s1403 + $0x80] sm:$0xf]
        %v1426 = vld [vmem:[%s1403 + $0x84] sm:$0xff]
        %v1427 = vld [vmem:[%s1403 + $0x8c] sm:$0xf]
        %v1428 = vld [vmem:[%s1403 + $0x90] sm:$0xff]
        %v1429 = vld [vmem:[%s1403 + $0x98] sm:$0xf]
        %v1430 = vld [vmem:[%s1403 + $0x9c] sm:$0xff]
        %v1431 = vld [vmem:[%s1403 + $0xa4] sm:$0xf]
        %v1432 = vld [vmem:[%s1403 + $0xa8] sm:$0xff]
        %v1433 = vld [vmem:[%s1403 + $0xb0] sm:$0xf]
        %v1434 = vld [vmem:[%s1403 + $0xb4] sm:$0xff]
        %v1435 = vld [vmem:[%s1403 + $0xbc] sm:$0xf]
        %s1436 = scalar_lea.vmem %s7, 3
        %v1437 = vld [vmem:[%s1436] sm:$0x7]
        %v1439 = vperm.slane %v1437, 0
        %v1440 = vperm.slane %v1437, 1
        %v1441 = vperm.slane %v1437, 2
        %v1477 = vunpack.c.l.b16 %v1404
        %v1478 = vunpack.c.h.b16 %v1404
        %v1479 = vunpack.c.l.b16 %v1405
        %v1480 = vunpack.c.l.b16 %v1406
        %v1481 = vunpack.c.h.b16 %v1406
        %v1482 = vunpack.c.l.b16 %v1407
        %v1483 = vunpack.c.l.b16 %v1408
        %v1484 = vunpack.c.h.b16 %v1408
        %v1485 = vunpack.c.l.b16 %v1409
        %v1486 = vunpack.c.l.b16 %v1410
        %v1487 = vunpack.c.h.b16 %v1410
        %v1488 = vunpack.c.l.b16 %v1411
        %v1489 = vunpack.c.l.b16 %v1412
        %v1490 = vunpack.c.h.b16 %v1412
        %v1491 = vunpack.c.l.b16 %v1413
        %v1492 = vunpack.c.l.b16 %v1414
        %v1493 = vunpack.c.h.b16 %v1414
        %v1494 = vunpack.c.l.b16 %v1415
        %v1495 = vunpack.c.l.b16 %v1416
        %v1496 = vunpack.c.h.b16 %v1416
        %v1497 = vunpack.c.l.b16 %v1417
        %v1498 = vunpack.c.l.b16 %v1418
        %v1499 = vunpack.c.h.b16 %v1418
        %v1500 = vunpack.c.l.b16 %v1419
        %v1501 = vunpack.c.l.b16 %v1420
        %v1502 = vunpack.c.h.b16 %v1420
        %v1503 = vunpack.c.l.b16 %v1421
        %v1504 = vunpack.c.l.b16 %v1422
        %v1505 = vunpack.c.h.b16 %v1422
        %v1506 = vunpack.c.l.b16 %v1423
        %v1507 = vunpack.c.l.b16 %v1424
        %v1508 = vunpack.c.h.b16 %v1424
        %v1509 = vunpack.c.l.b16 %v1425
        %v1510 = vunpack.c.l.b16 %v1426
        %v1511 = vunpack.c.h.b16 %v1426
        %v1512 = vunpack.c.l.b16 %v1427
        %v1513 = vunpack.c.l.b16 %v1428
        %v1514 = vunpack.c.h.b16 %v1428
        %v1515 = vunpack.c.l.b16 %v1429
        %v1516 = vunpack.c.l.b16 %v1430
        %v1517 = vunpack.c.h.b16 %v1430
        %v1518 = vunpack.c.l.b16 %v1431
        %v1519 = vunpack.c.l.b16 %v1432
        %v1520 = vunpack.c.h.b16 %v1432
        %v1521 = vunpack.c.l.b16 %v1433
        %v1522 = vunpack.c.l.b16 %v1434
        %v1523 = vunpack.c.h.b16 %v1434
        %v1524 = vunpack.c.l.b16 %v1435
        %v1525 = vpack.c.b16 %v1480, %v1477
        %v1526 = vpack.c.b16 %v1481, %v1478
        %v1527 = vpack.c.b16 %v1482, %v1479
        %v1528 = vpack.c.b16 %v1486, %v1483
        %v1529 = vpack.c.b16 %v1487, %v1484
        %v1530 = vpack.c.b16 %v1488, %v1485
        %v1531 = vpack.c.b16 %v1492, %v1489
        %v1532 = vpack.c.b16 %v1493, %v1490
        %v1533 = vpack.c.b16 %v1494, %v1491
        %v1534 = vpack.c.b16 %v1498, %v1495
        %v1535 = vpack.c.b16 %v1499, %v1496
        %v1536 = vpack.c.b16 %v1500, %v1497
        %v1537 = vpack.c.b16 %v1504, %v1501
        %v1538 = vpack.c.b16 %v1505, %v1502
        %v1539 = vpack.c.b16 %v1506, %v1503
        %v1540 = vpack.c.b16 %v1510, %v1507
        %v1541 = vpack.c.b16 %v1511, %v1508
        %v1542 = vpack.c.b16 %v1512, %v1509
        %v1543 = vpack.c.b16 %v1516, %v1513
        %v1544 = vpack.c.b16 %v1517, %v1514
        %v1545 = vpack.c.b16 %v1518, %v1515
        %v1546 = vpack.c.b16 %v1522, %v1519
        %v1547 = vpack.c.b16 %v1523, %v1520
        %v1548 = vpack.c.b16 %v1524, %v1521
        %1573 = vmatpush.bf16.msra.mxu0 %v1546
        %1574 = vmatpush.bf16.msra.mxu0 %v1543
        %1575 = vmatpush.bf16.msra.mxu0 %v1540
        %1576 = vmatpush.bf16.msra.mxu0 %v1537
        %1577 = vmatpush.bf16.msra.mxu0 %v1534
        %1578 = vmatpush.bf16.msra.mxu0 %v1531
        %1579 = vmatpush.bf16.msra.mxu0 %v1528
        %1580 = vmatpush.bf16.msra.mxu0 %v1525
        %1581 = vmatmul.bf16.gmra.mxu0 %v1402
        %v1582 = vpop.f32.mrf.mxu0
        %v1583 = vadd.f32 %v1439, %v1582
        %v1584 = vpop.f32.mrf.mxu0
        %1585 = vdwg.mxu0
        %1586 = vmatpush.bf16.msra.mxu0 %v1547
        %1587 = vmatpush.bf16.msra.mxu0 %v1544
        %1588 = vmatpush.bf16.msra.mxu0 %v1541
        %1589 = vmatpush.bf16.msra.mxu0 %v1538
        %1590 = vmatpush.bf16.msra.mxu0 %v1535
        %1591 = vmatpush.bf16.msra.mxu0 %v1532
        %1592 = vmatpush.bf16.msra.mxu0 %v1529
        %1593 = vmatpush.bf16.msra.mxu0 %v1526
        %1594 = vmatmul.bf16.gmra.mxu0 %v1402
        %v1595 = vpop.f32.mrf.mxu0
        %v1596 = vadd.f32 %v1440, %v1595
        %v1597 = vpop.f32.mrf.mxu0
        %1598 = vdwg.mxu0
        %1599 = vmatpush.bf16.msra.mxu0 %v1548
        %1600 = vmatpush.bf16.msra.mxu0 %v1545
        %1601 = vmatpush.bf16.msra.mxu0 %v1542
        %1602 = vmatpush.bf16.msra.mxu0 %v1539
        %1603 = vmatpush.bf16.msra.mxu0 %v1536
        %1604 = vmatpush.bf16.msra.mxu0 %v1533
        %1605 = vmatpush.bf16.msra.mxu0 %v1530
        %1606 = vmatpush.bf16.msra.mxu0 %v1527
        %1607 = vmatmul.bf16.gmra.mxu0 %v1402
        %v1608 = vpop.f32.mrf.mxu0
        %v1609 = vadd.f32 %v1441, %v1608
        %v1610 = vpop.f32.mrf.mxu0
        %1611 = vdwg.mxu0
        %v1612 = vmul.f32 %v1596, %v986
        %v1613 = vmul.f32 %v1596, %v990
        %v1614 = vmul.f32 %v1596, %v994
        %v1615 = vmul.f32 %v1596, %v998
        %v1616 = vmul.f32 %v1609, %v986
        %v1617 = vmul.f32 %v1609, %v990
        %v1618 = vmul.f32 %v1609, %v994
        %v1619 = vmul.f32 %v1609, %v998
        %v1620 = vpack.c.bf16 %v1583, %v1583
        %v1621 = vpack.c.bf16 %v1613, %v1612
        %v1622 = vpack.c.bf16 %v1615, %v1614
        %1623 = vmatpush.bf16.xpose.msra.mxu0 0
        %1624 = vmatpush.bf16.xpose.msra.mxu0 0
        %1625 = vmatpush.bf16.xpose.msra.mxu0 0
        %1626 = vmatpush.bf16.xpose.msra.mxu0 0
        %1627 = vmatpush.bf16.xpose.msra.mxu0 0
        %1628 = vmatpush.bf16.xpose.msra.mxu0 0
        %1629 = vmatpush.bf16.xpose.msra.mxu0 %v1622
        %1630 = vmatpush.bf16.xpose.msra.mxu0 %v1621
        %1631 = vmatmul.bf16.gmra.mxu0 %v1620
        %v1632 = vpop.f32.mrf.mxu0
        %v1633 = vadd.f32 0.0, %v1632
        %v1634 = vpop.f32.mrf.mxu0
        %1635 = vdwg.mxu0
        %v1636 = vmul.f32 %v1633, 0.35355338
        %v1637 = vadd.f32 %v1636, %v1023
        %v1638 = vsel %vm1026, %v1637, -inf
        %1639 = vmax.xlane.f32.xlu0 %v1638
        %v1640 = vpop.xlane.xlu0 %1639
        %v1641 = vsub.f32 %v1637, %v1640
        %v1642 = vmul.f32 %v1641, 1.442695
        %v1643 = vpow.pop %v1642
        %v1644 = vpack.c.bf16 %v1643, %v1643
        %v1646 = vsel %vm1026, %v1644, 0
        %1648 = vmatpush.bf16.msra.mxu0 0
        %1649 = vmatpush.bf16.msra.mxu0 0
        %1650 = vmatpush.bf16.msra.mxu0 0
        %1651 = vmatpush.bf16.msra.mxu0 0
        %1652 = vmatpush.bf16.msra.mxu0 0
        %1653 = vmatpush.bf16.msra.mxu0 0
        %1654 = vmatpush.bf16.msra.mxu0 %v1043
        %1655 = vmatpush.bf16.msra.mxu0 %v1042
        %1656 = vmatmul.bf16.gmra.mxu0 %v1646
        %v1657 = vpop.f32.mrf.mxu0
        %v1658 = vadd.f32 0.0, %v1657
        %v1659 = vpop.f32.mrf.mxu0
        %1660 = vdwg.mxu0
        %v1661 = vrcp.pop %v1658
        %v1662 = vmul.f32 %v1643, %v1661
        %v1663 = vpack.c.bf16 %v1662, %v1662
        %v1664 = vpack.c.bf16 %v1617, %v1616
        %v1665 = vpack.c.bf16 %v1619, %v1618
        %v1667 = vsel %vm1026, %v1663, 0
        %1669 = vmatpush.bf16.msra.mxu0 0
        %1670 = vmatpush.bf16.msra.mxu0 0
        %1671 = vmatpush.bf16.msra.mxu0 0
        %1672 = vmatpush.bf16.msra.mxu0 0
        %1673 = vmatpush.bf16.msra.mxu0 0
        %1674 = vmatpush.bf16.msra.mxu0 0
        %1675 = vmatpush.bf16.msra.mxu0 %v1665
        %1676 = vmatpush.bf16.msra.mxu0 %v1664
        %1677 = vmatmul.bf16.gmra.mxu0 %v1667
        %v1678 = vpop.f32.mrf.mxu0
        %v1679 = vadd.f32 0.0, %v1678
        %v1680 = vpop.f32.mrf.mxu0
        %1681 = vdwg.mxu0
        %v1682 = vpack.c.bf16 %v1679, %v1679
        %s1683 = scalar_lea.vmem %s8, 64
        %v1684 = vld [vmem:[%s1683] sm:$0xf]
        %v1685 = vld [vmem:[%s1683 + $0x4] sm:$0xf]
        %v1686 = vld [vmem:[%s1683 + $0x8] sm:$0xf]
        %v1687 = vld [vmem:[%s1683 + $0xc] sm:$0xf]
        %v1688 = vld [vmem:[%s1683 + $0x10] sm:$0xf]
        %v1689 = vld [vmem:[%s1683 + $0x14] sm:$0xf]
        %v1690 = vld [vmem:[%s1683 + $0x18] sm:$0xf]
        %v1691 = vld [vmem:[%s1683 + $0x1c] sm:$0xf]
        %v1692 = vld [vmem:[%s1683 + $0x20] sm:$0xf]
        %v1693 = vld [vmem:[%s1683 + $0x24] sm:$0xf]
        %v1694 = vld [vmem:[%s1683 + $0x28] sm:$0xf]
        %v1695 = vld [vmem:[%s1683 + $0x2c] sm:$0xf]
        %v1696 = vld [vmem:[%s1683 + $0x30] sm:$0xf]
        %v1697 = vld [vmem:[%s1683 + $0x34] sm:$0xf]
        %v1698 = vld [vmem:[%s1683 + $0x38] sm:$0xf]
        %v1699 = vld [vmem:[%s1683 + $0x3c] sm:$0xf]
        %s1700 = scalar_lea.vmem %s9, 1
        %v1701 = vld [vmem:[%s1700] sm:$0x1]
        %v1703 = vperm.slane %v1701, 0
        %v1721 = vunpack.c.l.b16 %v1684
        %v1722 = vunpack.c.l.b16 %v1685
        %v1723 = vunpack.c.l.b16 %v1686
        %v1724 = vunpack.c.l.b16 %v1687
        %v1725 = vunpack.c.l.b16 %v1688
        %v1726 = vunpack.c.l.b16 %v1689
        %v1727 = vunpack.c.l.b16 %v1690
        %v1728 = vunpack.c.l.b16 %v1691
        %v1729 = vunpack.c.l.b16 %v1692
        %v1730 = vunpack.c.l.b16 %v1693
        %v1731 = vunpack.c.l.b16 %v1694
        %v1732 = vunpack.c.l.b16 %v1695
        %v1733 = vunpack.c.l.b16 %v1696
        %v1734 = vunpack.c.l.b16 %v1697
        %v1735 = vunpack.c.l.b16 %v1698
        %v1736 = vunpack.c.l.b16 %v1699
        %v1737 = vpack.c.b16 %v1722, %v1721
        %v1738 = vpack.c.b16 %v1724, %v1723
        %v1739 = vpack.c.b16 %v1726, %v1725
        %v1740 = vpack.c.b16 %v1728, %v1727
        %v1741 = vpack.c.b16 %v1730, %v1729
        %v1742 = vpack.c.b16 %v1732, %v1731
        %v1743 = vpack.c.b16 %v1734, %v1733
        %v1744 = vpack.c.b16 %v1736, %v1735
        %1753 = vmatpush.bf16.msra.mxu0 %v1744
        %1754 = vmatpush.bf16.msra.mxu0 %v1743
        %1755 = vmatpush.bf16.msra.mxu0 %v1742
        %1756 = vmatpush.bf16.msra.mxu0 %v1741
        %1757 = vmatpush.bf16.msra.mxu0 %v1740
        %1758 = vmatpush.bf16.msra.mxu0 %v1739
        %1759 = vmatpush.bf16.msra.mxu0 %v1738
        %1760 = vmatpush.bf16.msra.mxu0 %v1737
        %1761 = vmatmul.bf16.gmra.mxu0 %v1682
        %v1762 = vpop.f32.mrf.mxu0
        %v1763 = vadd.f32 %v1703, %v1762
        %v1764 = vpop.f32.mrf.mxu0
        %1765 = vdwg.mxu0
        %v1766 = vadd.f32 %v1763, %v1401
        %s1767 = scalar_lea.vmem %s10, 1
        %v1768 = vld [vmem:[%s1767] sm:$0x1]
        %s1769 = scalar_lea.vmem %s11, 1
        %v1770 = vld [vmem:[%s1769] sm:$0x1]
        %1771 = vadd.xlane.f32.xlu0 %v1766
        %v1772 = vpop.xlane.xlu0 %1771
        %v1773 = vmul.f32 %v1772, 0.03125
        %v1774 = vsub.f32 %v1766, %v1773
        %v1775 = vmul.f32 %v1774, %v751
        %v1776 = vmul.f32 %v1775, %v1775
        %1777 = vadd.xlane.f32.xlu0 %v1776
        %v1778 = vpop.xlane.xlu0 %1777
        %v1779 = vmul.f32 %v1778, 0.03125
        %v1780 = vadd.f32 %v1779, 1e-12
        %v1781 = vrsqrt.pop %v1780
        %v1782 = vmul.f32 %v1781, %v1780
        %v1783 = vmul.f32 %v1782, %v1781
        %v1784 = vmul.f32 0.5, %v1783
        %v1785 = vsub.f32 1.5, %v1784
        %v1786 = vmul.f32 %v1781, %v1785
        %vm1787 = vweird.f32 %v1780
        %vm1788 = vweird.f32 %v1781
        %vm1789 = vmor %vm1787, %vm1788
        %v1790 = vsel %vm1789, %v1781, %v1786
        %v1791 = vmul.f32 %v1775, %v1790
        %v1793 = vperm.slane %v1768, 0
        %v1795 = vmul.f32 %v1791, %v1793
        %v1797 = vperm.slane %v1770, 0
        %v1799 = vadd.f32 %v1795, %v1797
        %v1800 = vpack.c.bf16 %v1799, %v1799
        %s1801 = scalar_lea.vmem %s12, 64
        %v1802 = vld [vmem:[%s1801] sm:$0xf]
        %v1803 = vld [vmem:[%s1801 + $0x4] sm:$0xf]
        %v1804 = vld [vmem:[%s1801 + $0x8] sm:$0xf]
        %v1805 = vld [vmem:[%s1801 + $0xc] sm:$0xf]
        %v1806 = vld [vmem:[%s1801 + $0x10] sm:$0xf]
        %v1807 = vld [vmem:[%s1801 + $0x14] sm:$0xf]
        %v1808 = vld [vmem:[%s1801 + $0x18] sm:$0xf]
        %v1809 = vld [vmem:[%s1801 + $0x1c] sm:$0xf]
        %v1810 = vld [vmem:[%s1801 + $0x20] sm:$0xf]
        %v1811 = vld [vmem:[%s1801 + $0x24] sm:$0xf]
        %v1812 = vld [vmem:[%s1801 + $0x28] sm:$0xf]
        %v1813 = vld [vmem:[%s1801 + $0x2c] sm:$0xf]
        %v1814 = vld [vmem:[%s1801 + $0x30] sm:$0xf]
        %v1815 = vld [vmem:[%s1801 + $0x34] sm:$0xf]
        %v1816 = vld [vmem:[%s1801 + $0x38] sm:$0xf]
        %v1817 = vld [vmem:[%s1801 + $0x3c] sm:$0xf]
        %s1818 = scalar_lea.vmem %s13, 1
        %v1819 = vld [vmem:[%s1818] sm:$0x1]
        %v1821 = vperm.slane %v1819, 0
        %v1839 = vunpack.c.l.b16 %v1802
        %v1840 = vunpack.c.l.b16 %v1803
        %v1841 = vunpack.c.l.b16 %v1804
        %v1842 = vunpack.c.l.b16 %v1805
        %v1843 = vunpack.c.l.b16 %v1806
        %v1844 = vunpack.c.l.b16 %v1807
        %v1845 = vunpack.c.l.b16 %v1808
        %v1846 = vunpack.c.l.b16 %v1809
        %v1847 = vunpack.c.l.b16 %v1810
        %v1848 = vunpack.c.l.b16 %v1811
        %v1849 = vunpack.c.l.b16 %v1812
        %v1850 = vunpack.c.l.b16 %v1813
        %v1851 = vunpack.c.l.b16 %v1814
        %v1852 = vunpack.c.l.b16 %v1815
        %v1853 = vunpack.c.l.b16 %v1816
        %v1854 = vunpack.c.l.b16 %v1817
        %v1855 = vpack.c.b16 %v1840, %v1839
        %v1856 = vpack.c.b16 %v1842, %v1841
        %v1857 = vpack.c.b16 %v1844, %v1843
        %v1858 = vpack.c.b16 %v1846, %v1845
        %v1859 = vpack.c.b16 %v1848, %v1847
        %v1860 = vpack.c.b16 %v1850, %v1849
        %v1861 = vpack.c.b16 %v1852, %v1851
        %v1862 = vpack.c.b16 %v1854, %v1853
        %1871 = vmatpush.bf16.msra.mxu0 %v1862
        %1872 = vmatpush.bf16.msra.mxu0 %v1861
        %1873 = vmatpush.bf16.msra.mxu0 %v1860
        %1874 = vmatpush.bf16.msra.mxu0 %v1859
        %1875 = vmatpush.bf16.msra.mxu0 %v1858
        %1876 = vmatpush.bf16.msra.mxu0 %v1857
        %1877 = vmatpush.bf16.msra.mxu0 %v1856
        %1878 = vmatpush.bf16.msra.mxu0 %v1855
        %1879 = vmatmul.bf16.gmra.mxu0 %v1800
        %v1880 = vpop.f32.mrf.mxu0
        %v1881 = vadd.f32 %v1821, %v1880
        %v1882 = vpop.f32.mrf.mxu0
        %1883 = vdwg.mxu0
        %v1884 = vmul.f32 %v1881, %v1881
        %v1885 = vmul.f32 %v1881, %v1884
        %v1886 = vmul.f32 %v1885, 0.044715
        %v1887 = vadd.f32 %v1881, %v1886
        %v1888 = vmul.f32 %v1887, 0.7978846
        %v1889 = vtanh.pop %v1888
        %v1890 = vadd.f32 %v1889, 1.0
        %v1891 = vmul.f32 %v1890, 0.5
        %v1892 = vmul.f32 %v1881, %v1891
        %v1893 = vpack.c.bf16 %v1892, %v1892
        %s1894 = scalar_lea.vmem [#allocation5], 64
        %v1895 = vld [vmem:[%s1894] sm:$0xf]
        %v1896 = vld [vmem:[%s1894 + $0x4] sm:$0xf]
        %v1897 = vld [vmem:[%s1894 + $0x8] sm:$0xf]
        %v1898 = vld [vmem:[%s1894 + $0xc] sm:$0xf]
        %v1899 = vld [vmem:[%s1894 + $0x10] sm:$0xf]
        %v1900 = vld [vmem:[%s1894 + $0x14] sm:$0xf]
        %v1901 = vld [vmem:[%s1894 + $0x18] sm:$0xf]
        %v1902 = vld [vmem:[%s1894 + $0x1c] sm:$0xf]
        %v1903 = vld [vmem:[%s1894 + $0x20] sm:$0xf]
        %v1904 = vld [vmem:[%s1894 + $0x24] sm:$0xf]
        %v1905 = vld [vmem:[%s1894 + $0x28] sm:$0xf]
        %v1906 = vld [vmem:[%s1894 + $0x2c] sm:$0xf]
        %v1907 = vld [vmem:[%s1894 + $0x30] sm:$0xf]
        %v1908 = vld [vmem:[%s1894 + $0x34] sm:$0xf]
        %v1909 = vld [vmem:[%s1894 + $0x38] sm:$0xf]
        %v1910 = vld [vmem:[%s1894 + $0x3c] sm:$0xf]
        %s1911 = scalar_lea.vmem %s15, 1
        %v1912 = vld [vmem:[%s1911] sm:$0x1]
        %v1914 = vperm.slane %v1912, 0
        %v1932 = vunpack.c.l.b16 %v1895
        %v1933 = vunpack.c.l.b16 %v1896
        %v1934 = vunpack.c.l.b16 %v1897
        %v1935 = vunpack.c.l.b16 %v1898
        %v1936 = vunpack.c.l.b16 %v1899
        %v1937 = vunpack.c.l.b16 %v1900
        %v1938 = vunpack.c.l.b16 %v1901
        %v1939 = vunpack.c.l.b16 %v1902
        %v1940 = vunpack.c.l.b16 %v1903
        %v1941 = vunpack.c.l.b16 %v1904
        %v1942 = vunpack.c.l.b16 %v1905
        %v1943 = vunpack.c.l.b16 %v1906
        %v1944 = vunpack.c.l.b16 %v1907
        %v1945 = vunpack.c.l.b16 %v1908
        %v1946 = vunpack.c.l.b16 %v1909
        %v1947 = vunpack.c.l.b16 %v1910
        %v1948 = vpack.c.b16 %v1933, %v1932
        %v1949 = vpack.c.b16 %v1935, %v1934
        %v1950 = vpack.c.b16 %v1937, %v1936
        %v1951 = vpack.c.b16 %v1939, %v1938
        %v1952 = vpack.c.b16 %v1941, %v1940
        %v1953 = vpack.c.b16 %v1943, %v1942
        %v1954 = vpack.c.b16 %v1945, %v1944
        %v1955 = vpack.c.b16 %v1947, %v1946
        %1964 = vmatpush.bf16.msra.mxu0 %v1955
        %1965 = vmatpush.bf16.msra.mxu0 %v1954
        %1966 = vmatpush.bf16.msra.mxu0 %v1953
        %1967 = vmatpush.bf16.msra.mxu0 %v1952
        %1968 = vmatpush.bf16.msra.mxu0 %v1951
        %1969 = vmatpush.bf16.msra.mxu0 %v1950
        %1970 = vmatpush.bf16.msra.mxu0 %v1949
        %1971 = vmatpush.bf16.msra.mxu0 %v1948
        %1972 = vmatmul.bf16.gmra.mxu0 %v1893
        %v1973 = vpop.f32.mrf.mxu0
        %v1974 = vadd.f32 %v1914, %v1973
        %v1975 = vpop.f32.mrf.mxu0
        %1976 = vdwg.mxu0
        %v1977 = vadd.f32 %v1974, %v1799
        %s1978 = scalar_lea.vmem %s16, 1
        %v1979 = vld [vmem:[%s1978] sm:$0x1]
        %s1980 = scalar_lea.vmem %s17, 1
        %v1981 = vld [vmem:[%s1980] sm:$0x1]
        %1982 = vadd.xlane.f32.xlu0 %v1977
        %v1983 = vpop.xlane.xlu0 %1982
        %v1984 = vmul.f32 %v1983, 0.03125
        %v1985 = vsub.f32 %v1977, %v1984
        %v1986 = vmul.f32 %v1985, %v751
        %v1987 = vmul.f32 %v1986, %v1986
        %1988 = vadd.xlane.f32.xlu0 %v1987
        %v1989 = vpop.xlane.xlu0 %1988
        %v1990 = vmul.f32 %v1989, 0.03125
        %v1991 = vadd.f32 %v1990, 1e-12
        %v1992 = vrsqrt.pop %v1991
        %v1993 = vmul.f32 %v1992, %v1991
        %v1994 = vmul.f32 %v1993, %v1992
        %v1995 = vmul.f32 0.5, %v1994
        %v1996 = vsub.f32 1.5, %v1995
        %v1997 = vmul.f32 %v1992, %v1996
        %vm1998 = vweird.f32 %v1991
        %vm1999 = vweird.f32 %v1992
        %vm2000 = vmor %vm1998, %vm1999
        %v2001 = vsel %vm2000, %v1992, %v1997
        %v2002 = vmul.f32 %v1986, %v2001
        %v2004 = vperm.slane %v1979, 0
        %v2006 = vmul.f32 %v2002, %v2004
        %v2008 = vperm.slane %v1981, 0
        %v2010 = vadd.f32 %v2006, %v2008
        %v2011 = vpack.c.bf16 %v2010, %v2010
        %v2012 = vld [vmem:[%s18] sm:$0xf]
        %v2013 = vld [vmem:[%s18 + $0x4] sm:$0xf]
        %v2014 = vld [vmem:[%s18 + $0x8] sm:$0xf]
        %v2015 = vld [vmem:[%s18 + $0xc] sm:$0xf]
        %v2016 = vld [vmem:[%s18 + $0x10] sm:$0xf]
        %v2017 = vld [vmem:[%s18 + $0x14] sm:$0xf]
        %v2018 = vld [vmem:[%s18 + $0x18] sm:$0xf]
        %v2019 = vld [vmem:[%s18 + $0x1c] sm:$0xf]
        %v2020 = vld [vmem:[%s18 + $0x20] sm:$0xf]
        %v2021 = vld [vmem:[%s18 + $0x24] sm:$0xf]
        %v2022 = vld [vmem:[%s18 + $0x28] sm:$0xf]
        %v2023 = vld [vmem:[%s18 + $0x2c] sm:$0xf]
        %v2024 = vld [vmem:[%s18 + $0x30] sm:$0xf]
        %v2025 = vld [vmem:[%s18 + $0x34] sm:$0xf]
        %v2026 = vld [vmem:[%s18 + $0x38] sm:$0xf]
        %v2027 = vld [vmem:[%s18 + $0x3c] sm:$0xf]
        %v2028 = vld [vmem:[%s19] sm:$0x1]
        %v2030 = vperm.slane %v2028, 0
        %v2048 = vunpack.c.l.b16 %v2012
        %v2049 = vunpack.c.l.b16 %v2013
        %v2050 = vunpack.c.l.b16 %v2014
        %v2051 = vunpack.c.l.b16 %v2015
        %v2052 = vunpack.c.l.b16 %v2016
        %v2053 = vunpack.c.l.b16 %v2017
        %v2054 = vunpack.c.l.b16 %v2018
        %v2055 = vunpack.c.l.b16 %v2019
        %v2056 = vunpack.c.l.b16 %v2020
        %v2057 = vunpack.c.l.b16 %v2021
        %v2058 = vunpack.c.l.b16 %v2022
        %v2059 = vunpack.c.l.b16 %v2023
        %v2060 = vunpack.c.l.b16 %v2024
        %v2061 = vunpack.c.l.b16 %v2025
        %v2062 = vunpack.c.l.b16 %v2026
        %v2063 = vunpack.c.l.b16 %v2027
        %v2064 = vpack.c.b16 %v2049, %v2048
        %v2065 = vpack.c.b16 %v2051, %v2050
        %v2066 = vpack.c.b16 %v2053, %v2052
        %v2067 = vpack.c.b16 %v2055, %v2054
        %v2068 = vpack.c.b16 %v2057, %v2056
        %v2069 = vpack.c.b16 %v2059, %v2058
        %v2070 = vpack.c.b16 %v2061, %v2060
        %v2071 = vpack.c.b16 %v2063, %v2062
        %2080 = vmatpush.bf16.msra.mxu0 %v2071
        %2081 = vmatpush.bf16.msra.mxu0 %v2070
        %2082 = vmatpush.bf16.msra.mxu0 %v2069
        %2083 = vmatpush.bf16.msra.mxu0 %v2068
        %2084 = vmatpush.bf16.msra.mxu0 %v2067
        %2085 = vmatpush.bf16.msra.mxu0 %v2066
        %2086 = vmatpush.bf16.msra.mxu0 %v2065
        %2087 = vmatpush.bf16.msra.mxu0 %v2064
        %2088 = vmatmul.bf16.gmra.mxu0 %v2011
        %v2089 = vpop.f32.mrf.mxu0
        %v2090 = vadd.f32 %v2030, %v2089
        %v2091 = vpop.f32.mrf.mxu0
        %2092 = vdwg.mxu0
        %v2093 = vtanh.pop %v2090
        %v2094 = vpack.c.bf16 %v2093, %v2093
        %v2095 = vld [vmem:[%s20] sm:$0xf]
        %v2096 = vld [vmem:[%s20 + $0x4] sm:$0xf]
        %v2097 = vld [vmem:[%s20 + $0x8] sm:$0xf]
        %v2098 = vld [vmem:[%s20 + $0xc] sm:$0xf]
        %v2099 = vld [vmem:[%s20 + $0x10] sm:$0xf]
        %v2100 = vld [vmem:[%s20 + $0x14] sm:$0xf]
        %v2101 = vld [vmem:[%s20 + $0x18] sm:$0xf]
        %v2102 = vld [vmem:[%s20 + $0x1c] sm:$0xf]
        %v2103 = vld [vmem:[%s20 + $0x20] sm:$0xf]
        %v2104 = vld [vmem:[%s20 + $0x24] sm:$0xf]
        %v2105 = vld [vmem:[%s20 + $0x28] sm:$0xf]
        %v2106 = vld [vmem:[%s20 + $0x2c] sm:$0xf]
        %v2107 = vld [vmem:[%s20 + $0x30] sm:$0xf]
        %v2108 = vld [vmem:[%s20 + $0x34] sm:$0xf]
        %v2109 = vld [vmem:[%s20 + $0x38] sm:$0xf]
        %v2110 = vld [vmem:[%s20 + $0x3c] sm:$0xf]
        %v2111 = vld [vmem:[%s21] sm:$0x1]
        %v2113 = vperm.slane %v2111, 0
        %v2131 = vunpack.c.l.b16 %v2095
        %v2132 = vunpack.c.l.b16 %v2096
        %v2133 = vunpack.c.l.b16 %v2097
        %v2134 = vunpack.c.l.b16 %v2098
        %v2135 = vunpack.c.l.b16 %v2099
        %v2136 = vunpack.c.l.b16 %v2100
        %v2137 = vunpack.c.l.b16 %v2101
        %v2138 = vunpack.c.l.b16 %v2102
        %v2139 = vunpack.c.l.b16 %v2103
        %v2140 = vunpack.c.l.b16 %v2104
        %v2141 = vunpack.c.l.b16 %v2105
        %v2142 = vunpack.c.l.b16 %v2106
        %v2143 = vunpack.c.l.b16 %v2107
        %v2144 = vunpack.c.l.b16 %v2108
        %v2145 = vunpack.c.l.b16 %v2109
        %v2146 = vunpack.c.l.b16 %v2110
        %v2147 = vpack.c.b16 %v2132, %v2131
        %v2148 = vpack.c.b16 %v2134, %v2133
        %v2149 = vpack.c.b16 %v2136, %v2135
        %v2150 = vpack.c.b16 %v2138, %v2137
        %v2151 = vpack.c.b16 %v2140, %v2139
        %v2152 = vpack.c.b16 %v2142, %v2141
        %v2153 = vpack.c.b16 %v2144, %v2143
        %v2154 = vpack.c.b16 %v2146, %v2145
        %2163 = vmatpush.bf16.msra.mxu0 %v2154
        %2164 = vmatpush.bf16.msra.mxu0 %v2153
        %2165 = vmatpush.bf16.msra.mxu0 %v2152
        %2166 = vmatpush.bf16.msra.mxu0 %v2151
        %2167 = vmatpush.bf16.msra.mxu0 %v2150
        %2168 = vmatpush.bf16.msra.mxu0 %v2149
        %2169 = vmatpush.bf16.msra.mxu0 %v2148
        %2170 = vmatpush.bf16.msra.mxu0 %v2147
        %2171 = vmatmul.bf16.gmra.mxu0 %v2094
        %v2172 = vpop.f32.mrf.mxu0
        %v2173 = vadd.f32 %v2113, %v2172
        %v2174 = vpop.f32.mrf.mxu0
        %2175 = vdwg.mxu0
        %2176 = vst [vmem:[%s718] sm:$0x1] %v2173
        %s2177 = sand.u32 %s518, 1
        %s2178 = scalar_lea.sflag [#allocation4], %s2177
        %s2179 = sand.u32 %s518, 1
        %s2180 = scalar_lea.vmem [#allocation7], %s2179
        // Predicated region
        $region117: #{sentimental_classifier_forward.1} parent=107 // pred_check
          %p2181 = pneg %p528
        $region118: #{sentimental_classifier_forward.1} parent=107 // pred_check_branch
          %2183 = sbr.rel (%p2181) target = $region120
        $region119: #{sentimental_classifier_forward.1} parent=107 // pred_region
          %2185 = vsyncadd %s2178, 0
          %s2186 = scalar_lea.hbm %s22, %s38
          %s2188 = sshll.u32 %s2180, 4
          %s2189 = int_to_ptr.vmem [resolvable:$true] %s2188
          %s2190 = sshll.u32 %s2186, 4
          %s2191 = int_to_ptr.hbm [resolvable:$true] %s2190
          %2193 = dma.vmem_to_hbm [thread:$0]  %s2189, 16, %s2191, %s2178
        $region120: #{sentimental_classifier_forward.1} parent=107 // pred_fallthru
          _
      $region108: #{sentimental_classifier_forward.1} parent=5 // pred_fallthru
        _
      %p2194 = scmp.le.s32.totalorder 2, %s33
      // Predicated region
      $region121: #{sentimental_classifier_forward.1} parent=5 // pred_check
        %p2195 = pneg %p2194
      $region122: #{sentimental_classifier_forward.1} parent=5 // pred_check_branch
        %2197 = sbr.rel (%p2195) target = $region124
      $region123: #{sentimental_classifier_forward.1} parent=5 // pred_region
        %s2198 = ssub.s32 %s33, 2
        // Predicated region
        $region125: #{sentimental_classifier_forward.1} parent=123 // pred_check
          %p2199 = pneg %p534
        $region126: #{sentimental_classifier_forward.1} parent=123 // pred_check_branch
          %2201 = sbr.rel (%p2199) target = $region128
        $region127: #{sentimental_classifier_forward.1} parent=123 // pred_region
          %s2202 = sand.u32 %s519, 1
          %s2203 = scalar_lea.sflag [#allocation4], %s2202
          %s2204 = sand.u32 %s519, 1
          %s2205 = scalar_lea.vmem [#allocation7], %s2204
          %2207 = dma.done %s2203, 16
        $region128: #{sentimental_classifier_forward.1} parent=123 // pred_fallthru
          _
      $region124: #{sentimental_classifier_forward.1} parent=5 // pred_fallthru
        _
    $region6: #{sentimental_classifier_forward.1} parent=1 // loop_footer
      %s37 = sadd.s32 1, %s33
    $region7: #{sentimental_classifier_forward.1} parent=1 // loop_footer_branch
      %32 = sbr.rel target = $region3
    $region8: #{sentimental_classifier_forward.1} parent=1 // loop_exit
      _
    %2208 = vsyncpa [#allocation3], 1
    %s2209 = scalar_lea.sflag [#allocation3], 1
    %2210 = vsyncpa %s2209, 1
    %2211 = vsyncpa [#allocation6], 1
    %2212 = vsyncpa [#allocation4], 1
    %s2213 = scalar_lea.sflag [#allocation4], 1
    %2214 = vsyncpa %s2213, 1

</llo_original>
